<compile_context>
chip_gen: v6e
topology: v6e:2x2x1
jax: 0.10.0
libtpu: 0.0.40
codegen_flags: <defaults>
</compile_context>

<pallas_src>
import jax
import jax.numpy as jnp
from jax.experimental import pallas as pl
from jax.experimental.pallas import tpu as pltpu


_DEFAULT_BLOCK_B_CAP = 4096
_CHIP_CFG = None              # (num_tensorcores, has_bf16_vpu, vmem_limit_bytes)
_SINGLE_BUFFER_CONSTS = None  # probed once: pl.Buffered(1) on grid-invariant inputs


def _chip_config():
    """Chip-generation knobs: TC count, bf16-VPU availability, scoped-VMEM limit."""
    global _CHIP_CFG
    if _CHIP_CFG is None:
        try:
            kind = jax.devices()[0].device_kind.lower()
        except Exception:
            kind = ""
        is_v7 = ("v7" in kind) or ("7x" in kind)
        is_v6 = "v6" in kind
        num_cores = 2 if is_v7 else 1            # v7x has 2 TensorCores per chip
        bf16_vpu = is_v6 or is_v7                # v5e has no bf16 VALUs
        # Stay well under physical VMEM (v7x: 64 MiB, v5e/v6e: 128 MiB) while
        # lifting the small scoped defaults (16/32 MiB) for big block_b tiles.
        vmem_limit = (48 << 20) if is_v7 else (64 << 20)
        _CHIP_CFG = (num_cores, bf16_vpu, vmem_limit)
    return _CHIP_CFG


def _layer1_in_f32(compute_dtype):
    if jnp.dtype(compute_dtype) == jnp.dtype(jnp.float32):
        return True
    return not _chip_config()[1]                 # f32 layer-1 on chips w/o bf16 VPU


def _pick_block_b(B, num_cores, cap=_DEFAULT_BLOCK_B_CAP):
    """Lane tile over the (already 128-padded) batch."""
    assert B % 128 == 0 and B > 0
    cap = max(128, (int(cap) // 128) * 128)
    top = min(cap, B)
    if num_cores > 1:
        # v7x: prefer >=2 equal steps with a step count divisible by the TC count
        # so "parallel" batch sharding keeps both TensorCores equally busy.
        for cand in range(top, 127, -128):
            if B % cand == 0 and (B // cand) >= 2 and (B // cand) % num_cores == 0:
                return cand
    # Single TC (or no balanced split exists): fewest, biggest tiles — the grid
    # is a serial loop, every extra step is ~0.35 us of pure overhead.
    for cand in range(top, 127, -128):
        if B % cand == 0:
            return cand
    return B


def _disc_kernel(x_ref,
                 w1_ref, b1_ref,
                 w2_ref, b2_ref,
                 w3_ref, b3_ref,
                 w4_ref, b4_ref,
                 o_ref):
    f32 = jnp.float32
    cd = w2_ref.dtype          # MXU operand dtype (bf16 by default)
    l1_dt = w1_ref.dtype       # layer-1 VPU dtype (bf16 only where the chip has bf16 VALUs)

    # ---- Layer 1: Linear(2, 256) as two broadcast FMAs on the VPU (K=2 would waste the MXU).
    x0 = x_ref[0:1, :].astype(l1_dt)             # (1, block_b)
    x1 = x_ref[1:2, :].astype(l1_dt)             # (1, block_b)
    w1 = w1_ref[...]                             # (256, 2), already in l1_dt
    h1 = w1[:, 0:1] * x0 + w1[:, 1:2] * x1 + b1_ref[...]
    h1 = jnp.maximum(h1, 0.0)                    # ReLU; Dropout(0.3) == identity in eval

    # ---- Layer 2: Linear(256, 128) on the MXU, f32 accumulation.
    h2 = jnp.dot(w2_ref[...], h1.astype(cd), preferred_element_type=f32) + b2_ref[...]
    h2 = jnp.maximum(h2, 0.0)

    # ---- Layer 3: Linear(128, 64).
    h3 = jnp.dot(w3_ref[...], h2.astype(cd), preferred_element_type=f32) + b3_ref[...]
    h3 = jnp.maximum(h3, 0.0)                    # (64, block_b) f32

    # ---- Layer 4: Linear(64, 1) as multiply + sublane (XLU) reduce; lane-dense output.
    logits = jnp.sum(w4_ref[...] * h3, axis=0, keepdims=True) + b4_ref[...]   # (1, block_b)

    # Sigmoid: exp on the EUP; approx reciprocal uses the EUP vrcp slot (free vs VALU Newton).
    o_ref[...] = pl.reciprocal(1.0 + jnp.exp(-logits), approx=True).astype(o_ref.dtype)


def _forward_call(x_t, w1, b1, w2, b2, w3, b3, w4, b4, *,
                  block_b, vmem_limit, single_buffer_consts, cost):
    _, B = x_t.shape
    grid = (B // block_b,)

    if single_buffer_consts and hasattr(pl, "Buffered"):
        # Grid-invariant weights/biases: no point double-buffering them.
        def const_spec(shape):
            return pl.BlockSpec(shape, lambda i: (0, 0), pipeline_mode=pl.Buffered(1))
    else:
        def const_spec(shape):
            return pl.BlockSpec(shape, lambda i: (0, 0))

    return pl.pallas_call(
        _disc_kernel,
        out_shape=jax.ShapeDtypeStruct((1, B), jnp.float32),
        grid_spec=pltpu.PrefetchScalarGridSpec(
            num_scalar_prefetch=0,
            grid=grid,
            in_specs=[
                pl.BlockSpec((2, block_b), lambda i: (0, i)),      # x^T tile: batch on lanes
                const_spec(w1.shape), const_spec(b1.shape),
                const_spec(w2.shape), const_spec(b2.shape),
                const_spec(w3.shape), const_spec(b3.shape),
                const_spec(w4.shape), const_spec(b4.shape),
            ],
            out_specs=pl.BlockSpec((1, block_b), lambda i: (0, i)),  # lane-dense output
        ),
        compiler_params=pltpu.CompilerParams(
            dimension_semantics=("parallel",),      # shards batch across v7x TCs; no-op on 1-TC chips
            vmem_limit_bytes=int(vmem_limit),
        ),
        cost_estimate=cost,
    )(x_t, w1, b1, w2, b2, w3, b3, w4, b4)


def discriminator_forward(x, params, *, block_b=None, compute_dtype=jnp.bfloat16,
                          block_b_cap=_DEFAULT_BLOCK_B_CAP):
    """x: (B, 2) float32.  params: w1..w3 as (out, in), w4 as (64, 1), biases as (out, 1)."""
    global _SINGLE_BUFFER_CONSTS

    B_orig, f_in = x.shape
    assert f_in == 2
    num_cores, _, vmem_limit = _chip_config()

    # Pad ragged batches up to a lane multiple (128): keeps tiling uniform and
    # prevents a giant single-tile VMEM blowup; padded rows are sliced off below.
    B = ((B_orig + 127) // 128) * 128
    if B != B_orig:
        x = jnp.pad(x, ((0, B - B_orig), (0, 0)))

    if block_b is None:
        block_b = _pick_block_b(B, num_cores, block_b_cap)
    assert B % block_b == 0, "padded B must be divisible by block_b"
    assert block_b == B or block_b % 128 == 0, \
        "block_b must be a multiple of 128 lanes (or the full padded batch)"

    cd = jnp.dtype(compute_dtype)
    f32 = jnp.float32
    l1_dt = f32 if _layer1_in_f32(cd) else cd

    x_t = x.T.astype(f32)                         # input stays f32; casts happen in-kernel
    w1 = params["w1"].astype(l1_dt); b1 = params["b1"].astype(l1_dt)
    w2 = params["w2"].astype(cd);    b2 = params["b2"].astype(f32)
    w3 = params["w3"].astype(cd);    b3 = params["b3"].astype(f32)
    w4 = params["w4"].astype(f32);   b4 = params["b4"].astype(f32)

    operands = (x_t, w1, b1, w2, b2, w3, b3, w4, b4)
    cost = pl.CostEstimate(
        flops=int(2 * B * (2 * 256 + 256 * 128 + 128 * 64 + 64)),
        transcendentals=int(B),
        bytes_accessed=int(sum(int(a.size) * a.dtype.itemsize for a in operands) + B * 4),
    )
    kwargs = dict(block_b=block_b, vmem_limit=vmem_limit, cost=cost)

    if _SINGLE_BUFFER_CONSTS in (None, True):
        try:
            out_t = jax.block_until_ready(
                _forward_call(*operands, single_buffer_consts=True, **kwargs))
            _SINGLE_BUFFER_CONSTS = True
        except Exception:
            if _SINGLE_BUFFER_CONSTS is True:
                raise                              # worked before -> real error, don't mask it
            _SINGLE_BUFFER_CONSTS = False          # this build rejects Buffered(1); fall back
            out_t = _forward_call(*operands, single_buffer_consts=False, **kwargs)
    else:
        out_t = _forward_call(*operands, single_buffer_consts=False, **kwargs)

    return out_t.T[:B_orig]                        # back to PyTorch's (B, 1)


def init_params(key):
    """PyTorch nn.Linear default init, stored in kernel-friendly layouts:
    w1..w3: (out, in); w4 pre-transposed to (in, 1); biases as (out, 1) columns."""
    dims = [(2, 256), (256, 128), (128, 64), (64, 1)]
    params = {}
    for idx, (fin, fout) in enumerate(dims, start=1):
        key, kw, kb = jax.random.split(key, 3)
        bound = 1.0 / (fin ** 0.5)                 # uniform(-1/sqrt(fan_in), 1/sqrt(fan_in))
        wshape = (fout, fin) if idx < 4 else (fin, fout)   # w4 stored as (64, 1)
        params[f"w{idx}"] = jax.random.uniform(kw, wshape, jnp.float32, -bound, bound)
        params[f"b{idx}"] = jax.random.uniform(kb, (fout, 1), jnp.float32, -bound, bound)
    return params


def _reference_forward(x, params, compute_dtype=jnp.bfloat16, l1_in_f32=True):
    """Pure-JAX reference mirroring the kernel's mixed-precision scheme."""
    cd = jnp.dtype(compute_dtype)
    f32 = jnp.float32
    l1_dt = f32 if l1_in_f32 else cd
    h = x.astype(l1_dt) @ params["w1"].astype(l1_dt).T + params["b1"].astype(l1_dt).T
    h = jnp.maximum(h, 0.0)
    for wk, bk in (("w2", "b2"), ("w3", "b3")):
        h = jnp.dot(h.astype(cd), params[wk].astype(cd).T,
                    preferred_element_type=f32) + params[bk].T
        h = jnp.maximum(h, 0.0)
    logits = h @ params["w4"].astype(f32) + params["b4"].T
    return jax.nn.sigmoid(logits)


if __name__ == "__main__":
    key = jax.random.PRNGKey(0)
    k_params, k_x1, k_x2 = jax.random.split(key, 3)
    params = init_params(k_params)

    # 1) f32 compute path (v5e-friendly), lane-aligned batch.
    B1 = 256
    x1 = jax.random.normal(k_x1, (B1, 2), jnp.float32)
    out1 = jax.block_until_ready(
        discriminator_forward(x1, params, compute_dtype=jnp.float32))
    ref1 = _reference_forward(x1, params, jnp.float32, l1_in_f32=True)
    assert out1.shape == (B1, 1)
    assert jnp.allclose(out1, ref1, atol=5e-3, rtol=5e-3), \
        float(jnp.max(jnp.abs(out1 - ref1)))

    # 2) default bf16 path with a ragged batch (exercises 128-lane padding + output slicing).
    B2 = 200
    x2 = jax.random.normal(k_x2, (B2, 2), jnp.float32)
    out2 = jax.block_until_ready(discriminator_forward(x2, params))
    ref2 = _reference_forward(x2, params, jnp.bfloat16,
                              l1_in_f32=_layer1_in_f32(jnp.bfloat16))
    assert out2.shape == (B2, 1)
    assert jnp.allclose(out2, ref2, atol=2e-2, rtol=2e-2), \
        float(jnp.max(jnp.abs(out2 - ref2)))

    print("KERNEL_OK")
</pallas_src>

<mosaic_0001>
module attributes {stable_mosaic.version = 11 : i64} {
  func.func @_disc_kernel(%arg0: i32, %arg1: memref<2x256xf32, #tpu.memory_space<vmem>>, %arg2: memref<256x2xf32, #tpu.memory_space<vmem>>, %arg3: memref<256x1xf32, #tpu.memory_space<vmem>>, %arg4: memref<128x256xf32, #tpu.memory_space<vmem>>, %arg5: memref<128x1xf32, #tpu.memory_space<vmem>>, %arg6: memref<64x128xf32, #tpu.memory_space<vmem>>, %arg7: memref<64x1xf32, #tpu.memory_space<vmem>>, %arg8: memref<64x1xf32, #tpu.memory_space<vmem>>, %arg9: memref<1x1xf32, #tpu.memory_space<vmem>>, %arg10: memref<1x256xf32, #tpu.memory_space<vmem>>) attributes {dimension_semantics = [#tpu.dimension_semantics<parallel>], iteration_bounds = array<i64: 1>, scalar_prefetch = 0 : i64, scratch_operands = 0 : i64, tpu.core_type = #tpu.core_type<tc>, window_params = [{transform_indices = @transform_0, window_bounds = array<i64: 2, 256>}, {pipeline_mode = #tpu.pipeline_mode<synchronous>, transform_indices = @transform_1, window_bounds = array<i64: 256, 2>}, {pipeline_mode = #tpu.pipeline_mode<synchronous>, transform_indices = @transform_2, window_bounds = array<i64: 256, 1>}, {pipeline_mode = #tpu.pipeline_mode<synchronous>, transform_indices = @transform_3, window_bounds = array<i64: 128, 256>}, {pipeline_mode = #tpu.pipeline_mode<synchronous>, transform_indices = @transform_4, window_bounds = array<i64: 128, 1>}, {pipeline_mode = #tpu.pipeline_mode<synchronous>, transform_indices = @transform_5, window_bounds = array<i64: 64, 128>}, {pipeline_mode = #tpu.pipeline_mode<synchronous>, transform_indices = @transform_6, window_bounds = array<i64: 64, 1>}, {pipeline_mode = #tpu.pipeline_mode<synchronous>, transform_indices = @transform_7, window_bounds = array<i64: 64, 1>}, {pipeline_mode = #tpu.pipeline_mode<synchronous>, transform_indices = @transform_8, window_bounds = array<i64: 1, 1>}, {transform_indices = @transform_9, window_bounds = array<i64: 1, 256>}]} {
    %c0 = arith.constant 0 : index
    %c0_0 = arith.constant 0 : index
    %0 = vector.load %arg1[%c0, %c0_0] : memref<2x256xf32, #tpu.memory_space<vmem>>, vector<1x256xf32>
    %c1 = arith.constant 1 : index
    %c0_1 = arith.constant 0 : index
    %1 = vector.load %arg1[%c1, %c0_1] : memref<2x256xf32, #tpu.memory_space<vmem>>, vector<1x256xf32>
    %c0_2 = arith.constant 0 : index
    %c0_3 = arith.constant 0 : index
    %2 = vector.load %arg2[%c0_2, %c0_3] : memref<256x2xf32, #tpu.memory_space<vmem>>, vector<256x2xf32>
    %3 = vector.extract_strided_slice %2 {offsets = [0, 0], sizes = [256, 1], strides = [1, 1]} : vector<256x2xf32> to vector<256x1xf32>
    %4 = vector.broadcast %3 : vector<256x1xf32> to vector<256x256xf32>
    %5 = vector.broadcast %0 : vector<1x256xf32> to vector<256x256xf32>
    %6 = arith.mulf %4, %5 : vector<256x256xf32>
    %7 = vector.extract_strided_slice %2 {offsets = [0, 1], sizes = [256, 1], strides = [1, 1]} : vector<256x2xf32> to vector<256x1xf32>
    %8 = vector.broadcast %7 : vector<256x1xf32> to vector<256x256xf32>
    %9 = vector.broadcast %1 : vector<1x256xf32> to vector<256x256xf32>
    %10 = arith.mulf %8, %9 : vector<256x256xf32>
    %11 = arith.addf %6, %10 : vector<256x256xf32>
    %c0_4 = arith.constant 0 : index
    %c0_5 = arith.constant 0 : index
    %12 = vector.load %arg3[%c0_4, %c0_5] : memref<256x1xf32, #tpu.memory_space<vmem>>, vector<256x1xf32>
    %13 = vector.broadcast %12 : vector<256x1xf32> to vector<256x256xf32>
    %14 = arith.addf %11, %13 : vector<256x256xf32>
    %cst = arith.constant 0.000000e+00 : f32
    %15 = vector.broadcast %cst : f32 to vector<256x256xf32>
    %16 = arith.maximumf %14, %15 : vector<256x256xf32>
    %c0_6 = arith.constant 0 : index
    %c0_7 = arith.constant 0 : index
    %17 = vector.load %arg4[%c0_6, %c0_7] : memref<128x256xf32, #tpu.memory_space<vmem>>, vector<128x256xf32>
    %cst_8 = arith.constant dense<0.000000e+00> : vector<128x256xf32>
    %18 = tpu.matmul %17, %16, %cst_8 {dimension_numbers = #tpu.dot_dimension_numbers<[1], [0], [0], [1], [0, 0, 1, 1], [], []>} : vector<128x256xf32>, vector<256x256xf32>, vector<128x256xf32> -> vector<128x256xf32>
    %c0_9 = arith.constant 0 : index
    %c0_10 = arith.constant 0 : index
    %19 = vector.load %arg5[%c0_9, %c0_10] : memref<128x1xf32, #tpu.memory_space<vmem>>, vector<128x1xf32>
    %20 = vector.broadcast %19 : vector<128x1xf32> to vector<128x256xf32>
    %21 = arith.addf %18, %20 : vector<128x256xf32>
    %cst_11 = arith.constant 0.000000e+00 : f32
    %22 = vector.broadcast %cst_11 : f32 to vector<128x256xf32>
    %23 = arith.maximumf %21, %22 : vector<128x256xf32>
    %c0_12 = arith.constant 0 : index
    %c0_13 = arith.constant 0 : index
    %24 = vector.load %arg6[%c0_12, %c0_13] : memref<64x128xf32, #tpu.memory_space<vmem>>, vector<64x128xf32>
    %cst_14 = arith.constant dense<0.000000e+00> : vector<64x256xf32>
    %25 = tpu.matmul %24, %23, %cst_14 {dimension_numbers = #tpu.dot_dimension_numbers<[1], [0], [0], [1], [0, 0, 1, 1], [], []>} : vector<64x128xf32>, vector<128x256xf32>, vector<64x256xf32> -> vector<64x256xf32>
    %c0_15 = arith.constant 0 : index
    %c0_16 = arith.constant 0 : index
    %26 = vector.load %arg7[%c0_15, %c0_16] : memref<64x1xf32, #tpu.memory_space<vmem>>, vector<64x1xf32>
    %27 = vector.broadcast %26 : vector<64x1xf32> to vector<64x256xf32>
    %28 = arith.addf %25, %27 : vector<64x256xf32>
    %cst_17 = arith.constant 0.000000e+00 : f32
    %29 = vector.broadcast %cst_17 : f32 to vector<64x256xf32>
    %30 = arith.maximumf %28, %29 : vector<64x256xf32>
    %c0_18 = arith.constant 0 : index
    %c0_19 = arith.constant 0 : index
    %31 = vector.load %arg8[%c0_18, %c0_19] : memref<64x1xf32, #tpu.memory_space<vmem>>, vector<64x1xf32>
    %32 = vector.broadcast %31 : vector<64x1xf32> to vector<64x256xf32>
    %33 = arith.mulf %32, %30 : vector<64x256xf32>
    %cst_20 = arith.constant dense<0.000000e+00> : vector<256xf32>
    %34 = vector.multi_reduction <add>, %33, %cst_20 [0] : vector<64x256xf32> to vector<256xf32>
    %35 = vector.shape_cast %34 : vector<256xf32> to vector<1x256xf32>
    %c0_21 = arith.constant 0 : index
    %c0_22 = arith.constant 0 : index
    %36 = vector.load %arg9[%c0_21, %c0_22] : memref<1x1xf32, #tpu.memory_space<vmem>>, vector<1x1xf32>
    %37 = vector.broadcast %36 : vector<1x1xf32> to vector<1x256xf32>
    %38 = arith.addf %35, %37 : vector<1x256xf32>
    %cst_23 = arith.constant 0.000000e+00 : f32
    %39 = vector.broadcast %cst_23 : f32 to vector<1x256xf32>
    %40 = arith.subf %39, %38 : vector<1x256xf32>
    %41 = math.exp %40 : vector<1x256xf32>
    %cst_24 = arith.constant 1.000000e+00 : f32
    %42 = vector.broadcast %cst_24 : f32 to vector<1x256xf32>
    %43 = arith.addf %42, %41 : vector<1x256xf32>
    %44 = tpu.reciprocal %43 {approx = true} : vector<1x256xf32> -> vector<1x256xf32>
    %c0_25 = arith.constant 0 : index
    %c0_26 = arith.constant 0 : index
    %45 = vector.load %arg10[%c0_25, %c0_26] : memref<1x256xf32, #tpu.memory_space<vmem>>, vector<1x256xf32>
    tpu.vector_store %arg10[%c0_25, %c0_26], %44 {strides = array<i32>} : memref<1x256xf32, #tpu.memory_space<vmem>>, vector<1x256xf32>,
    return
  }
  func.func @transform_0(%arg0: i32) -> (i32, i32) {
    %c0_i32 = arith.constant 0 : i32
    %c0_i32_0 = arith.constant 0 : i32
    return %c0_i32, %arg0 : i32, i32
  }
  func.func @transform_1(%arg0: i32) -> (i32, i32) {
    %c0_i32 = arith.constant 0 : i32
    %c0_i32_0 = arith.constant 0 : i32
    %c0_i32_1 = arith.constant 0 : i32
    return %c0_i32, %c0_i32_0 : i32, i32
  }
  func.func @transform_2(%arg0: i32) -> (i32, i32) {
    %c0_i32 = arith.constant 0 : i32
    %c0_i32_0 = arith.constant 0 : i32
    %c0_i32_1 = arith.constant 0 : i32
    return %c0_i32, %c0_i32_0 : i32, i32
  }
  func.func @transform_3(%arg0: i32) -> (i32, i32) {
    %c0_i32 = arith.constant 0 : i32
    %c0_i32_0 = arith.constant 0 : i32
    %c0_i32_1 = arith.constant 0 : i32
    return %c0_i32, %c0_i32_0 : i32, i32
  }
  func.func @transform_4(%arg0: i32) -> (i32, i32) {
    %c0_i32 = arith.constant 0 : i32
    %c0_i32_0 = arith.constant 0 : i32
    %c0_i32_1 = arith.constant 0 : i32
    return %c0_i32, %c0_i32_0 : i32, i32
  }
  func.func @transform_5(%arg0: i32) -> (i32, i32) {
    %c0_i32 = arith.constant 0 : i32
    %c0_i32_0 = arith.constant 0 : i32
    %c0_i32_1 = arith.constant 0 : i32
    return %c0_i32, %c0_i32_0 : i32, i32
  }
  func.func @transform_6(%arg0: i32) -> (i32, i32) {
    %c0_i32 = arith.constant 0 : i32
    %c0_i32_0 = arith.constant 0 : i32
    %c0_i32_1 = arith.constant 0 : i32
    return %c0_i32, %c0_i32_0 : i32, i32
  }
  func.func @transform_7(%arg0: i32) -> (i32, i32) {
    %c0_i32 = arith.constant 0 : i32
    %c0_i32_0 = arith.constant 0 : i32
    %c0_i32_1 = arith.constant 0 : i32
    return %c0_i32, %c0_i32_0 : i32, i32
  }
  func.func @transform_8(%arg0: i32) -> (i32, i32) {
    %c0_i32 = arith.constant 0 : i32
    %c0_i32_0 = arith.constant 0 : i32
    %c0_i32_1 = arith.constant 0 : i32
    return %c0_i32, %c0_i32_0 : i32, i32
  }
  func.func @transform_9(%arg0: i32) -> (i32, i32) {
    %c0_i32 = arith.constant 0 : i32
    %c0_i32_0 = arith.constant 0 : i32
    return %c0_i32, %arg0 : i32, i32
  }
}

module attributes {stable_mosaic.version = 11 : i64} {
  func.func @_disc_kernel(%arg0: i32, %arg1: memref<2x256xf32, #tpu.memory_space<vmem>>, %arg2: memref<256x2xf32, #tpu.memory_space<vmem>>, %arg3: memref<256x1xf32, #tpu.memory_space<vmem>>, %arg4: memref<128x256xf32, #tpu.memory_space<vmem>>, %arg5: memref<128x1xf32, #tpu.memory_space<vmem>>, %arg6: memref<64x128xf32, #tpu.memory_space<vmem>>, %arg7: memref<64x1xf32, #tpu.memory_space<vmem>>, %arg8: memref<64x1xf32, #tpu.memory_space<vmem>>, %arg9: memref<1x1xf32, #tpu.memory_space<vmem>>, %arg10: memref<1x256xf32, #tpu.memory_space<vmem>>) attributes {dimension_semantics = [#tpu.dimension_semantics<parallel>], iteration_bounds = array<i64: 1>, scalar_prefetch = 0 : i64, scratch_operands = 0 : i64, tpu.core_type = #tpu.core_type<tc>, window_params = [{transform_indices = @transform_0, window_bounds = array<i64: 2, 256>}, {pipeline_mode = #tpu.pipeline_mode<synchronous>, transform_indices = @transform_1, window_bounds = array<i64: 256, 2>}, {pipeline_mode = #tpu.pipeline_mode<synchronous>, transform_indices = @transform_2, window_bounds = array<i64: 256, 1>}, {pipeline_mode = #tpu.pipeline_mode<synchronous>, transform_indices = @transform_3, window_bounds = array<i64: 128, 256>}, {pipeline_mode = #tpu.pipeline_mode<synchronous>, transform_indices = @transform_4, window_bounds = array<i64: 128, 1>}, {pipeline_mode = #tpu.pipeline_mode<synchronous>, transform_indices = @transform_5, window_bounds = array<i64: 64, 128>}, {pipeline_mode = #tpu.pipeline_mode<synchronous>, transform_indices = @transform_6, window_bounds = array<i64: 64, 1>}, {pipeline_mode = #tpu.pipeline_mode<synchronous>, transform_indices = @transform_7, window_bounds = array<i64: 64, 1>}, {pipeline_mode = #tpu.pipeline_mode<synchronous>, transform_indices = @transform_8, window_bounds = array<i64: 1, 1>}, {transform_indices = @transform_9, window_bounds = array<i64: 1, 256>}]} {
    %c0 = arith.constant 0 : index
    %c0_0 = arith.constant 0 : index
    %0 = vector.load %arg1[%c0, %c0_0] : memref<2x256xf32, #tpu.memory_space<vmem>>, vector<1x256xf32>
    %c1 = arith.constant 1 : index
    %c0_1 = arith.constant 0 : index
    %1 = vector.load %arg1[%c1, %c0_1] : memref<2x256xf32, #tpu.memory_space<vmem>>, vector<1x256xf32>
    %c0_2 = arith.constant 0 : index
    %c0_3 = arith.constant 0 : index
    %2 = vector.load %arg2[%c0_2, %c0_3] : memref<256x2xf32, #tpu.memory_space<vmem>>, vector<256x2xf32>
    %3 = vector.extract_strided_slice %2 {offsets = [0, 0], sizes = [256, 1], strides = [1, 1]} : vector<256x2xf32> to vector<256x1xf32>
    %4 = vector.broadcast %3 : vector<256x1xf32> to vector<256x256xf32>
    %5 = vector.broadcast %0 : vector<1x256xf32> to vector<256x256xf32>
    %6 = arith.mulf %4, %5 : vector<256x256xf32>
    %7 = vector.extract_strided_slice %2 {offsets = [0, 1], sizes = [256, 1], strides = [1, 1]} : vector<256x2xf32> to vector<256x1xf32>
    %8 = vector.broadcast %7 : vector<256x1xf32> to vector<256x256xf32>
    %9 = vector.broadcast %1 : vector<1x256xf32> to vector<256x256xf32>
    %10 = arith.mulf %8, %9 : vector<256x256xf32>
    %11 = arith.addf %6, %10 : vector<256x256xf32>
    %c0_4 = arith.constant 0 : index
    %c0_5 = arith.constant 0 : index
    %12 = vector.load %arg3[%c0_4, %c0_5] : memref<256x1xf32, #tpu.memory_space<vmem>>, vector<256x1xf32>
    %13 = vector.broadcast %12 : vector<256x1xf32> to vector<256x256xf32>
    %14 = arith.addf %11, %13 : vector<256x256xf32>
    %cst = arith.constant 0.000000e+00 : f32
    %15 = vector.broadcast %cst : f32 to vector<256x256xf32>
    %16 = arith.maximumf %14, %15 : vector<256x256xf32>
    %c0_6 = arith.constant 0 : index
    %c0_7 = arith.constant 0 : index
    %17 = vector.load %arg4[%c0_6, %c0_7] : memref<128x256xf32, #tpu.memory_space<vmem>>, vector<128x256xf32>
    %cst_8 = arith.constant dense<0.000000e+00> : vector<128x256xf32>
    %18 = tpu.matmul %17, %16, %cst_8 {dimension_numbers = #tpu.dot_dimension_numbers<[1], [0], [0], [1], [0, 0, 1, 1], [], []>} : vector<128x256xf32>, vector<256x256xf32>, vector<128x256xf32> -> vector<128x256xf32>
    %c0_9 = arith.constant 0 : index
    %c0_10 = arith.constant 0 : index
    %19 = vector.load %arg5[%c0_9, %c0_10] : memref<128x1xf32, #tpu.memory_space<vmem>>, vector<128x1xf32>
    %20 = vector.broadcast %19 : vector<128x1xf32> to vector<128x256xf32>
    %21 = arith.addf %18, %20 : vector<128x256xf32>
    %cst_11 = arith.constant 0.000000e+00 : f32
    %22 = vector.broadcast %cst_11 : f32 to vector<128x256xf32>
    %23 = arith.maximumf %21, %22 : vector<128x256xf32>
    %c0_12 = arith.constant 0 : index
    %c0_13 = arith.constant 0 : index
    %24 = vector.load %arg6[%c0_12, %c0_13] : memref<64x128xf32, #tpu.memory_space<vmem>>, vector<64x128xf32>
    %cst_14 = arith.constant dense<0.000000e+00> : vector<64x256xf32>
    %25 = tpu.matmul %24, %23, %cst_14 {dimension_numbers = #tpu.dot_dimension_numbers<[1], [0], [0], [1], [0, 0, 1, 1], [], []>} : vector<64x128xf32>, vector<128x256xf32>, vector<64x256xf32> -> vector<64x256xf32>
    %c0_15 = arith.constant 0 : index
    %c0_16 = arith.constant 0 : index
    %26 = vector.load %arg7[%c0_15, %c0_16] : memref<64x1xf32, #tpu.memory_space<vmem>>, vector<64x1xf32>
    %27 = vector.broadcast %26 : vector<64x1xf32> to vector<64x256xf32>
    %28 = arith.addf %25, %27 : vector<64x256xf32>
    %cst_17 = arith.constant 0.000000e+00 : f32
    %29 = vector.broadcast %cst_17 : f32 to vector<64x256xf32>
    %30 = arith.maximumf %28, %29 : vector<64x256xf32>
    %c0_18 = arith.constant 0 : index
    %c0_19 = arith.constant 0 : index
    %31 = vector.load %arg8[%c0_18, %c0_19] : memref<64x1xf32, #tpu.memory_space<vmem>>, vector<64x1xf32>
    %32 = vector.broadcast %31 : vector<64x1xf32> to vector<64x256xf32>
    %33 = arith.mulf %32, %30 : vector<64x256xf32>
    %cst_20 = arith.constant dense<0.000000e+00> : vector<256xf32>
    %34 = vector.multi_reduction <add>, %33, %cst_20 [0] : vector<64x256xf32> to vector<256xf32>
    %35 = vector.shape_cast %34 : vector<256xf32> to vector<1x256xf32>
    %c0_21 = arith.constant 0 : index
    %c0_22 = arith.constant 0 : index
    %36 = vector.load %arg9[%c0_21, %c0_22] : memref<1x1xf32, #tpu.memory_space<vmem>>, vector<1x1xf32>
    %37 = vector.broadcast %36 : vector<1x1xf32> to vector<1x256xf32>
    %38 = arith.addf %35, %37 : vector<1x256xf32>
    %cst_23 = arith.constant 0.000000e+00 : f32
    %39 = vector.broadcast %cst_23 : f32 to vector<1x256xf32>
    %40 = arith.subf %39, %38 : vector<1x256xf32>
    %41 = math.exp %40 : vector<1x256xf32>
    %cst_24 = arith.constant 1.000000e+00 : f32
    %42 = vector.broadcast %cst_24 : f32 to vector<1x256xf32>
    %43 = arith.addf %42, %41 : vector<1x256xf32>
    %44 = tpu.reciprocal %43 {approx = true} : vector<1x256xf32> -> vector<1x256xf32>
    %c0_25 = arith.constant 0 : index
    %c0_26 = arith.constant 0 : index
    %45 = vector.load %arg10[%c0_25, %c0_26] : memref<1x256xf32, #tpu.memory_space<vmem>>, vector<1x256xf32>
    tpu.vector_store %arg10[%c0_25, %c0_26], %44 {strides = array<i32>} : memref<1x256xf32, #tpu.memory_space<vmem>>, vector<1x256xf32>,
    return
  }
  func.func @transform_0(%arg0: i32) -> (i32, i32) {
    %c0_i32 = arith.constant 0 : i32
    %c0_i32_0 = arith.constant 0 : i32
    return %c0_i32, %arg0 : i32, i32
  }
  func.func @transform_1(%arg0: i32) -> (i32, i32) {
    %c0_i32 = arith.constant 0 : i32
    %c0_i32_0 = arith.constant 0 : i32
    %c0_i32_1 = arith.constant 0 : i32
    return %c0_i32, %c0_i32_0 : i32, i32
  }
  func.func @transform_2(%arg0: i32) -> (i32, i32) {
    %c0_i32 = arith.constant 0 : i32
    %c0_i32_0 = arith.constant 0 : i32
    %c0_i32_1 = arith.constant 0 : i32
    return %c0_i32, %c0_i32_0 : i32, i32
  }
  func.func @transform_3(%arg0: i32) -> (i32, i32) {
    %c0_i32 = arith.constant 0 : i32
    %c0_i32_0 = arith.constant 0 : i32
    %c0_i32_1 = arith.constant 0 : i32
    return %c0_i32, %c0_i32_0 : i32, i32
  }
  func.func @transform_4(%arg0: i32) -> (i32, i32) {
    %c0_i32 = arith.constant 0 : i32
    %c0_i32_0 = arith.constant 0 : i32
    %c0_i32_1 = arith.constant 0 : i32
    return %c0_i32, %c0_i32_0 : i32, i32
  }
  func.func @transform_5(%arg0: i32) -> (i32, i32) {
    %c0_i32 = arith.constant 0 : i32
    %c0_i32_0 = arith.constant 0 : i32
    %c0_i32_1 = arith.constant 0 : i32
    return %c0_i32, %c0_i32_0 : i32, i32
  }
  func.func @transform_6(%arg0: i32) -> (i32, i32) {
    %c0_i32 = arith.constant 0 : i32
    %c0_i32_0 = arith.constant 0 : i32
    %c0_i32_1 = arith.constant 0 : i32
    return %c0_i32, %c0_i32_0 : i32, i32
  }
  func.func @transform_7(%arg0: i32) -> (i32, i32) {
    %c0_i32 = arith.constant 0 : i32
    %c0_i32_0 = arith.constant 0 : i32
    %c0_i32_1 = arith.constant 0 : i32
    return %c0_i32, %c0_i32_0 : i32, i32
  }
  func.func @transform_8(%arg0: i32) -> (i32, i32) {
    %c0_i32 = arith.constant 0 : i32
    %c0_i32_0 = arith.constant 0 : i32
    %c0_i32_1 = arith.constant 0 : i32
    return %c0_i32, %c0_i32_0 : i32, i32
  }
  func.func @transform_9(%arg0: i32) -> (i32, i32) {
    %c0_i32 = arith.constant 0 : i32
    %c0_i32_0 = arith.constant 0 : i32
    return %c0_i32, %arg0 : i32, i32
  }
}

</mosaic_0001>

<llo_original>
// kernel: tpu_custom_call.1
$region0: #{tpu_custom_call.1}
  #allocation0 [shape = 'u32[]', space=smem, size = 0x4, offset = 0x4, fixed_abs, tag = 'smem constant byte address 0x4 - core index']
  #allocation1 [shape = 'u32[144,128]{1,0:T(1,128)}', space=vmem, size = 0x12000, scoped, tag = 'internal scratch']
  #allocation2 [shape = 'f32[1,1]{1,0:T(1,128)S(1)}', space=vmem, size = 0x200, scoped, tag = 'scoped memory for tpu_custom_call.1']
  %s0 = inlined_call_operand.vmem [shape: f32[2,256], index: 0, kind: input, shape index: {}]
  %s1 = inlined_call_operand.vmem [shape: f32[256,2], index: 1, kind: input, shape index: {}]
  %s2 = inlined_call_operand.vmem [shape: f32[256,1], index: 2, kind: input, shape index: {}]
  %s3 = inlined_call_operand.vmem [shape: f32[128,256], index: 3, kind: input, shape index: {}]
  %s4 = inlined_call_operand.vmem [shape: f32[128,1], index: 4, kind: input, shape index: {}]
  %s5 = inlined_call_operand.vmem [shape: f32[64,128], index: 5, kind: input, shape index: {}]
  %s6 = inlined_call_operand.vmem [shape: f32[64,1], index: 6, kind: input, shape index: {}]
  %s7 = inlined_call_operand.vmem [shape: f32[64,1], index: 7, kind: input, shape index: {}]
  %s8 = inlined_call_operand.<no memory space> [shape: f32[1,1], index: 8, kind: input, shape index: {}]
  %s9 = inlined_call_operand.hbm [shape: f32[1,256], index: 9, kind: output, shape index: {}]
  %s10 = sld [smem:[#allocation0]]
  $region46: #{tpu_custom_call.1} parent=0
    _
  %s12 = ssub.s32 1, %s10
  %s13 = scalar_select 0, %s12, %s10
  %v14 = vstv %s8
  %15 = vst [vmem:[#allocation2] sm:$0x1] %v14
  $region1: #{tpu_custom_call.1} parent=0
    #allocation3 [shape = 'u8[1024]{0}', space=vmem, size = 0x400, scoped, tag = 'output window, operand 0, single buffered']
    #allocation4 [shape = 's32[1]{0}', space=sflag, size = 0x4, scoped, tag = 'scoped memory for tpu_custom_call.1']
    %16 = vsyncpa [#allocation4], 0
    // Predicated region
    $region2: #{tpu_custom_call.1} parent=1 // pred_check
      _
    $region3: #{tpu_custom_call.1} parent=1 // pred_check_branch
      %18 = sbr.rel (0) target = $region5
    $region4: #{tpu_custom_call.1} parent=1 // pred_region
      _
    $region5: #{tpu_custom_call.1} parent=1 // pred_fallthru
      _
    // Predicated region
    $region6: #{tpu_custom_call.1} parent=1 // pred_check
      _
    $region7: #{tpu_custom_call.1} parent=1 // pred_check_branch
      %20 = sbr.rel (0) target = $region9
    $region8: #{tpu_custom_call.1} parent=1 // pred_region
      _
    $region9: #{tpu_custom_call.1} parent=1 // pred_fallthru
      _
    // Predicated region
    $region10: #{tpu_custom_call.1} parent=1 // pred_check
      _
    $region11: #{tpu_custom_call.1} parent=1 // pred_check_branch
      %22 = sbr.rel (0) target = $region13
    $region12: #{tpu_custom_call.1} parent=1 // pred_region
      _
    $region13: #{tpu_custom_call.1} parent=1 // pred_fallthru
      _
    // Predicated region
    $region14: #{tpu_custom_call.1} parent=1 // pred_check
      _
    $region15: #{tpu_custom_call.1} parent=1 // pred_check_branch
      %24 = sbr.rel (0) target = $region17
    $region16: #{tpu_custom_call.1} parent=1 // pred_region
      _
    $region17: #{tpu_custom_call.1} parent=1 // pred_fallthru
      _
    // Predicated region
    $region18: #{tpu_custom_call.1} parent=1 // pred_check
      _
    $region19: #{tpu_custom_call.1} parent=1 // pred_check_branch
      %26 = sbr.rel (0) target = $region21
    $region20: #{tpu_custom_call.1} parent=1 // pred_region
      _
    $region21: #{tpu_custom_call.1} parent=1 // pred_fallthru
      _
    // Predicated region
    $region22: #{tpu_custom_call.1} parent=1 // pred_check
      _
    $region23: #{tpu_custom_call.1} parent=1 // pred_check_branch
      %28 = sbr.rel (0) target = $region25
    $region24: #{tpu_custom_call.1} parent=1 // pred_region
      _
    $region25: #{tpu_custom_call.1} parent=1 // pred_fallthru
      _
    // Predicated region
    $region26: #{tpu_custom_call.1} parent=1 // pred_check
      _
    $region27: #{tpu_custom_call.1} parent=1 // pred_check_branch
      %30 = sbr.rel (0) target = $region29
    $region28: #{tpu_custom_call.1} parent=1 // pred_region
      _
    $region29: #{tpu_custom_call.1} parent=1 // pred_fallthru
      _
    // Predicated region
    $region30: #{tpu_custom_call.1} parent=1 // pred_check
      _
    $region31: #{tpu_custom_call.1} parent=1 // pred_check_branch
      %32 = sbr.rel (0) target = $region33
    $region32: #{tpu_custom_call.1} parent=1 // pred_region
      _
    $region33: #{tpu_custom_call.1} parent=1 // pred_fallthru
      _
    // Predicated region
    $region34: #{tpu_custom_call.1} parent=1 // pred_check
      _
    $region35: #{tpu_custom_call.1} parent=1 // pred_check_branch
      %34 = sbr.rel (0) target = $region37
    $region36: #{tpu_custom_call.1} parent=1 // pred_region
      _
    $region37: #{tpu_custom_call.1} parent=1 // pred_fallthru
      _
    %v35 = vld [vmem:[%s0] ss:$2 sm:$0x3]
    %s36 = scalar_lea.vmem %s0, 1
    %v37 = vld [vmem:[%s36] ss:$2 sm:$0x3]
    %v38 = vld [vmem:[%s1] sm:$0xff]
    %v39 = vld [vmem:[%s1 + $0x8] sm:$0xff]
    %v40 = vld [vmem:[%s1 + $0x10] sm:$0xff]
    %v41 = vld [vmem:[%s1 + $0x18] sm:$0xff]
    %v42 = vld [vmem:[%s1 + $0x20] sm:$0xff]
    %v43 = vld [vmem:[%s1 + $0x28] sm:$0xff]
    %v44 = vld [vmem:[%s1 + $0x30] sm:$0xff]
    %v45 = vld [vmem:[%s1 + $0x38] sm:$0xff]
    %v46 = vld [vmem:[%s1 + $0x40] sm:$0xff]
    %v47 = vld [vmem:[%s1 + $0x48] sm:$0xff]
    %v48 = vld [vmem:[%s1 + $0x50] sm:$0xff]
    %v49 = vld [vmem:[%s1 + $0x58] sm:$0xff]
    %v50 = vld [vmem:[%s1 + $0x60] sm:$0xff]
    %v51 = vld [vmem:[%s1 + $0x68] sm:$0xff]
    %v52 = vld [vmem:[%s1 + $0x70] sm:$0xff]
    %v53 = vld [vmem:[%s1 + $0x78] sm:$0xff]
    %v54 = vld [vmem:[%s1 + $0x80] sm:$0xff]
    %v55 = vld [vmem:[%s1 + $0x88] sm:$0xff]
    %v56 = vld [vmem:[%s1 + $0x90] sm:$0xff]
    %v57 = vld [vmem:[%s1 + $0x98] sm:$0xff]
    %v58 = vld [vmem:[%s1 + $0xa0] sm:$0xff]
    %v59 = vld [vmem:[%s1 + $0xa8] sm:$0xff]
    %v60 = vld [vmem:[%s1 + $0xb0] sm:$0xff]
    %v61 = vld [vmem:[%s1 + $0xb8] sm:$0xff]
    %v62 = vld [vmem:[%s1 + $0xc0] sm:$0xff]
    %v63 = vld [vmem:[%s1 + $0xc8] sm:$0xff]
    %v64 = vld [vmem:[%s1 + $0xd0] sm:$0xff]
    %v65 = vld [vmem:[%s1 + $0xd8] sm:$0xff]
    %v66 = vld [vmem:[%s1 + $0xe0] sm:$0xff]
    %v67 = vld [vmem:[%s1 + $0xe8] sm:$0xff]
    %v68 = vld [vmem:[%s1 + $0xf0] sm:$0xff]
    %v69 = vld [vmem:[%s1 + $0xf8] sm:$0xff]
    %71 = vset.pattern.permute.xlu0 0
    %72 = vperm.xlu0 %71, %v38
    %v73 = vpop.permute.xlu0 %72
    %76 = vset.pattern.permute.xlu0 0
    %77 = vperm.xlu0 %76, %v39
    %v78 = vpop.permute.xlu0 %77
    %81 = vset.pattern.permute.xlu0 0
    %82 = vperm.xlu0 %81, %v40
    %v83 = vpop.permute.xlu0 %82
    %86 = vset.pattern.permute.xlu0 0
    %87 = vperm.xlu0 %86, %v41
    %v88 = vpop.permute.xlu0 %87
    %91 = vset.pattern.permute.xlu0 0
    %92 = vperm.xlu0 %91, %v42
    %v93 = vpop.permute.xlu0 %92
    %96 = vset.pattern.permute.xlu0 0
    %97 = vperm.xlu0 %96, %v43
    %v98 = vpop.permute.xlu0 %97
    %101 = vset.pattern.permute.xlu0 0
    %102 = vperm.xlu0 %101, %v44
    %v103 = vpop.permute.xlu0 %102
    %106 = vset.pattern.permute.xlu0 0
    %107 = vperm.xlu0 %106, %v45
    %v108 = vpop.permute.xlu0 %107
    %111 = vset.pattern.permute.xlu0 0
    %112 = vperm.xlu0 %111, %v46
    %v113 = vpop.permute.xlu0 %112
    %116 = vset.pattern.permute.xlu0 0
    %117 = vperm.xlu0 %116, %v47
    %v118 = vpop.permute.xlu0 %117
    %121 = vset.pattern.permute.xlu0 0
    %122 = vperm.xlu0 %121, %v48
    %v123 = vpop.permute.xlu0 %122
    %126 = vset.pattern.permute.xlu0 0
    %127 = vperm.xlu0 %126, %v49
    %v128 = vpop.permute.xlu0 %127
    %131 = vset.pattern.permute.xlu0 0
    %132 = vperm.xlu0 %131, %v50
    %v133 = vpop.permute.xlu0 %132
    %136 = vset.pattern.permute.xlu0 0
    %137 = vperm.xlu0 %136, %v51
    %v138 = vpop.permute.xlu0 %137
    %141 = vset.pattern.permute.xlu0 0
    %142 = vperm.xlu0 %141, %v52
    %v143 = vpop.permute.xlu0 %142
    %146 = vset.pattern.permute.xlu0 0
    %147 = vperm.xlu0 %146, %v53
    %v148 = vpop.permute.xlu0 %147
    %151 = vset.pattern.permute.xlu0 0
    %152 = vperm.xlu0 %151, %v54
    %v153 = vpop.permute.xlu0 %152
    %156 = vset.pattern.permute.xlu0 0
    %157 = vperm.xlu0 %156, %v55
    %v158 = vpop.permute.xlu0 %157
    %161 = vset.pattern.permute.xlu0 0
    %162 = vperm.xlu0 %161, %v56
    %v163 = vpop.permute.xlu0 %162
    %166 = vset.pattern.permute.xlu0 0
    %167 = vperm.xlu0 %166, %v57
    %v168 = vpop.permute.xlu0 %167
    %171 = vset.pattern.permute.xlu0 0
    %172 = vperm.xlu0 %171, %v58
    %v173 = vpop.permute.xlu0 %172
    %176 = vset.pattern.permute.xlu0 0
    %177 = vperm.xlu0 %176, %v59
    %v178 = vpop.permute.xlu0 %177
    %181 = vset.pattern.permute.xlu0 0
    %182 = vperm.xlu0 %181, %v60
    %v183 = vpop.permute.xlu0 %182
    %186 = vset.pattern.permute.xlu0 0
    %187 = vperm.xlu0 %186, %v61
    %v188 = vpop.permute.xlu0 %187
    %191 = vset.pattern.permute.xlu0 0
    %192 = vperm.xlu0 %191, %v62
    %v193 = vpop.permute.xlu0 %192
    %196 = vset.pattern.permute.xlu0 0
    %197 = vperm.xlu0 %196, %v63
    %v198 = vpop.permute.xlu0 %197
    %201 = vset.pattern.permute.xlu0 0
    %202 = vperm.xlu0 %201, %v64
    %v203 = vpop.permute.xlu0 %202
    %206 = vset.pattern.permute.xlu0 0
    %207 = vperm.xlu0 %206, %v65
    %v208 = vpop.permute.xlu0 %207
    %211 = vset.pattern.permute.xlu0 0
    %212 = vperm.xlu0 %211, %v66
    %v213 = vpop.permute.xlu0 %212
    %216 = vset.pattern.permute.xlu0 0
    %217 = vperm.xlu0 %216, %v67
    %v218 = vpop.permute.xlu0 %217
    %221 = vset.pattern.permute.xlu0 0
    %222 = vperm.xlu0 %221, %v68
    %v223 = vpop.permute.xlu0 %222
    %226 = vset.pattern.permute.xlu0 0
    %227 = vperm.xlu0 %226, %v69
    %v228 = vpop.permute.xlu0 %227
    %v231 = vlaneseq
    %v232 = vshrl.u32 %v231, 7
    %v233 = vsub.s32 0, %v232
    %v234 = vrot.slane %v35, %v233
    %v235 = vlaneseq
    %v236 = vshrl.u32 %v235, 7
    %v237 = vsub.s32 1, %v236
    %v238 = vrot.slane %v35, %v237
    %v241 = vmul.f32 %v73, %v234
    %v242 = vmul.f32 %v73, %v238
    %v243 = vmul.f32 %v78, %v234
    %v244 = vmul.f32 %v78, %v238
    %v245 = vmul.f32 %v83, %v234
    %v246 = vmul.f32 %v83, %v238
    %v247 = vmul.f32 %v88, %v234
    %v248 = vmul.f32 %v88, %v238
    %v249 = vmul.f32 %v93, %v234
    %v250 = vmul.f32 %v93, %v238
    %v251 = vmul.f32 %v98, %v234
    %v252 = vmul.f32 %v98, %v238
    %v253 = vmul.f32 %v103, %v234
    %v254 = vmul.f32 %v103, %v238
    %v255 = vmul.f32 %v108, %v234
    %v256 = vmul.f32 %v108, %v238
    %v257 = vmul.f32 %v113, %v234
    %v258 = vmul.f32 %v113, %v238
    %v259 = vmul.f32 %v118, %v234
    %v260 = vmul.f32 %v118, %v238
    %v261 = vmul.f32 %v123, %v234
    %v262 = vmul.f32 %v123, %v238
    %v263 = vmul.f32 %v128, %v234
    %v264 = vmul.f32 %v128, %v238
    %v265 = vmul.f32 %v133, %v234
    %v266 = vmul.f32 %v133, %v238
    %v267 = vmul.f32 %v138, %v234
    %v268 = vmul.f32 %v138, %v238
    %v269 = vmul.f32 %v143, %v234
    %v270 = vmul.f32 %v143, %v238
    %v271 = vmul.f32 %v148, %v234
    %v272 = vmul.f32 %v148, %v238
    %v273 = vmul.f32 %v153, %v234
    %v274 = vmul.f32 %v153, %v238
    %v275 = vmul.f32 %v158, %v234
    %v276 = vmul.f32 %v158, %v238
    %v277 = vmul.f32 %v163, %v234
    %v278 = vmul.f32 %v163, %v238
    %v279 = vmul.f32 %v168, %v234
    %v280 = vmul.f32 %v168, %v238
    %v281 = vmul.f32 %v173, %v234
    %v282 = vmul.f32 %v173, %v238
    %v283 = vmul.f32 %v178, %v234
    %v284 = vmul.f32 %v178, %v238
    %v285 = vmul.f32 %v183, %v234
    %v286 = vmul.f32 %v183, %v238
    %v287 = vmul.f32 %v188, %v234
    %v288 = vmul.f32 %v188, %v238
    %v289 = vmul.f32 %v193, %v234
    %v290 = vmul.f32 %v193, %v238
    %v291 = vmul.f32 %v198, %v234
    %v292 = vmul.f32 %v198, %v238
    %v293 = vmul.f32 %v203, %v234
    %v294 = vmul.f32 %v203, %v238
    %v295 = vmul.f32 %v208, %v234
    %v296 = vmul.f32 %v208, %v238
    %v297 = vmul.f32 %v213, %v234
    %v298 = vmul.f32 %v213, %v238
    %v299 = vmul.f32 %v218, %v234
    %v300 = vmul.f32 %v218, %v238
    %v301 = vmul.f32 %v223, %v234
    %v302 = vmul.f32 %v223, %v238
    %v303 = vmul.f32 %v228, %v234
    %v304 = vmul.f32 %v228, %v238
    %305 = vset.pattern.permute.xlu0 1
    %306 = vperm.xlu0 %305, %v38
    %v307 = vpop.permute.xlu0 %306
    %309 = vset.pattern.permute.xlu0 1
    %310 = vperm.xlu0 %309, %v39
    %v311 = vpop.permute.xlu0 %310
    %313 = vset.pattern.permute.xlu0 1
    %314 = vperm.xlu0 %313, %v40
    %v315 = vpop.permute.xlu0 %314
    %317 = vset.pattern.permute.xlu0 1
    %318 = vperm.xlu0 %317, %v41
    %v319 = vpop.permute.xlu0 %318
    %321 = vset.pattern.permute.xlu0 1
    %322 = vperm.xlu0 %321, %v42
    %v323 = vpop.permute.xlu0 %322
    %325 = vset.pattern.permute.xlu0 1
    %326 = vperm.xlu0 %325, %v43
    %v327 = vpop.permute.xlu0 %326
    %329 = vset.pattern.permute.xlu0 1
    %330 = vperm.xlu0 %329, %v44
    %v331 = vpop.permute.xlu0 %330
    %333 = vset.pattern.permute.xlu0 1
    %334 = vperm.xlu0 %333, %v45
    %v335 = vpop.permute.xlu0 %334
    %337 = vset.pattern.permute.xlu0 1
    %338 = vperm.xlu0 %337, %v46
    %v339 = vpop.permute.xlu0 %338
    %341 = vset.pattern.permute.xlu0 1
    %342 = vperm.xlu0 %341, %v47
    %v343 = vpop.permute.xlu0 %342
    %345 = vset.pattern.permute.xlu0 1
    %346 = vperm.xlu0 %345, %v48
    %v347 = vpop.permute.xlu0 %346
    %349 = vset.pattern.permute.xlu0 1
    %350 = vperm.xlu0 %349, %v49
    %v351 = vpop.permute.xlu0 %350
    %353 = vset.pattern.permute.xlu0 1
    %354 = vperm.xlu0 %353, %v50
    %v355 = vpop.permute.xlu0 %354
    %357 = vset.pattern.permute.xlu0 1
    %358 = vperm.xlu0 %357, %v51
    %v359 = vpop.permute.xlu0 %358
    %361 = vset.pattern.permute.xlu0 1
    %362 = vperm.xlu0 %361, %v52
    %v363 = vpop.permute.xlu0 %362
    %365 = vset.pattern.permute.xlu0 1
    %366 = vperm.xlu0 %365, %v53
    %v367 = vpop.permute.xlu0 %366
    %369 = vset.pattern.permute.xlu0 1
    %370 = vperm.xlu0 %369, %v54
    %v371 = vpop.permute.xlu0 %370
    %373 = vset.pattern.permute.xlu0 1
    %374 = vperm.xlu0 %373, %v55
    %v375 = vpop.permute.xlu0 %374
    %377 = vset.pattern.permute.xlu0 1
    %378 = vperm.xlu0 %377, %v56
    %v379 = vpop.permute.xlu0 %378
    %381 = vset.pattern.permute.xlu0 1
    %382 = vperm.xlu0 %381, %v57
    %v383 = vpop.permute.xlu0 %382
    %385 = vset.pattern.permute.xlu0 1
    %386 = vperm.xlu0 %385, %v58
    %v387 = vpop.permute.xlu0 %386
    %389 = vset.pattern.permute.xlu0 1
    %390 = vperm.xlu0 %389, %v59
    %v391 = vpop.permute.xlu0 %390
    %393 = vset.pattern.permute.xlu0 1
    %394 = vperm.xlu0 %393, %v60
    %v395 = vpop.permute.xlu0 %394
    %397 = vset.pattern.permute.xlu0 1
    %398 = vperm.xlu0 %397, %v61
    %v399 = vpop.permute.xlu0 %398
    %401 = vset.pattern.permute.xlu0 1
    %402 = vperm.xlu0 %401, %v62
    %v403 = vpop.permute.xlu0 %402
    %405 = vset.pattern.permute.xlu0 1
    %406 = vperm.xlu0 %405, %v63
    %v407 = vpop.permute.xlu0 %406
    %409 = vset.pattern.permute.xlu0 1
    %410 = vperm.xlu0 %409, %v64
    %v411 = vpop.permute.xlu0 %410
    %413 = vset.pattern.permute.xlu0 1
    %414 = vperm.xlu0 %413, %v65
    %v415 = vpop.permute.xlu0 %414
    %417 = vset.pattern.permute.xlu0 1
    %418 = vperm.xlu0 %417, %v66
    %v419 = vpop.permute.xlu0 %418
    %421 = vset.pattern.permute.xlu0 1
    %422 = vperm.xlu0 %421, %v67
    %v423 = vpop.permute.xlu0 %422
    %425 = vset.pattern.permute.xlu0 1
    %426 = vperm.xlu0 %425, %v68
    %v427 = vpop.permute.xlu0 %426
    %429 = vset.pattern.permute.xlu0 1
    %430 = vperm.xlu0 %429, %v69
    %v431 = vpop.permute.xlu0 %430
    %v434 = vlaneseq
    %v435 = vshrl.u32 %v434, 7
    %v436 = vsub.s32 0, %v435
    %v437 = vrot.slane %v37, %v436
    %v438 = vlaneseq
    %v439 = vshrl.u32 %v438, 7
    %v440 = vsub.s32 1, %v439
    %v441 = vrot.slane %v37, %v440
    %v444 = vmul.f32 %v307, %v437
    %v445 = vmul.f32 %v307, %v441
    %v446 = vmul.f32 %v311, %v437
    %v447 = vmul.f32 %v311, %v441
    %v448 = vmul.f32 %v315, %v437
    %v449 = vmul.f32 %v315, %v441
    %v450 = vmul.f32 %v319, %v437
    %v451 = vmul.f32 %v319, %v441
    %v452 = vmul.f32 %v323, %v437
    %v453 = vmul.f32 %v323, %v441
    %v454 = vmul.f32 %v327, %v437
    %v455 = vmul.f32 %v327, %v441
    %v456 = vmul.f32 %v331, %v437
    %v457 = vmul.f32 %v331, %v441
    %v458 = vmul.f32 %v335, %v437
    %v459 = vmul.f32 %v335, %v441
    %v460 = vmul.f32 %v339, %v437
    %v461 = vmul.f32 %v339, %v441
    %v462 = vmul.f32 %v343, %v437
    %v463 = vmul.f32 %v343, %v441
    %v464 = vmul.f32 %v347, %v437
    %v465 = vmul.f32 %v347, %v441
    %v466 = vmul.f32 %v351, %v437
    %v467 = vmul.f32 %v351, %v441
    %v468 = vmul.f32 %v355, %v437
    %v469 = vmul.f32 %v355, %v441
    %v470 = vmul.f32 %v359, %v437
    %v471 = vmul.f32 %v359, %v441
    %v472 = vmul.f32 %v363, %v437
    %v473 = vmul.f32 %v363, %v441
    %v474 = vmul.f32 %v367, %v437
    %v475 = vmul.f32 %v367, %v441
    %v476 = vmul.f32 %v371, %v437
    %v477 = vmul.f32 %v371, %v441
    %v478 = vmul.f32 %v375, %v437
    %v479 = vmul.f32 %v375, %v441
    %v480 = vmul.f32 %v379, %v437
    %v481 = vmul.f32 %v379, %v441
    %v482 = vmul.f32 %v383, %v437
    %v483 = vmul.f32 %v383, %v441
    %v484 = vmul.f32 %v387, %v437
    %v485 = vmul.f32 %v387, %v441
    %v486 = vmul.f32 %v391, %v437
    %v487 = vmul.f32 %v391, %v441
    %v488 = vmul.f32 %v395, %v437
    %v489 = vmul.f32 %v395, %v441
    %v490 = vmul.f32 %v399, %v437
    %v491 = vmul.f32 %v399, %v441
    %v492 = vmul.f32 %v403, %v437
    %v493 = vmul.f32 %v403, %v441
    %v494 = vmul.f32 %v407, %v437
    %v495 = vmul.f32 %v407, %v441
    %v496 = vmul.f32 %v411, %v437
    %v497 = vmul.f32 %v411, %v441
    %v498 = vmul.f32 %v415, %v437
    %v499 = vmul.f32 %v415, %v441
    %v500 = vmul.f32 %v419, %v437
    %v501 = vmul.f32 %v419, %v441
    %v502 = vmul.f32 %v423, %v437
    %v503 = vmul.f32 %v423, %v441
    %v504 = vmul.f32 %v427, %v437
    %v505 = vmul.f32 %v427, %v441
    %v506 = vmul.f32 %v431, %v437
    %v507 = vmul.f32 %v431, %v441
    %v508 = vadd.f32 %v241, %v444
    %v509 = vadd.f32 %v242, %v445
    %v510 = vadd.f32 %v243, %v446
    %v511 = vadd.f32 %v244, %v447
    %v512 = vadd.f32 %v245, %v448
    %v513 = vadd.f32 %v246, %v449
    %v514 = vadd.f32 %v247, %v450
    %v515 = vadd.f32 %v248, %v451
    %v516 = vadd.f32 %v249, %v452
    %v517 = vadd.f32 %v250, %v453
    %v518 = vadd.f32 %v251, %v454
    %v519 = vadd.f32 %v252, %v455
    %v520 = vadd.f32 %v253, %v456
    %v521 = vadd.f32 %v254, %v457
    %v522 = vadd.f32 %v255, %v458
    %v523 = vadd.f32 %v256, %v459
    %v524 = vadd.f32 %v257, %v460
    %v525 = vadd.f32 %v258, %v461
    %v526 = vadd.f32 %v259, %v462
    %v527 = vadd.f32 %v260, %v463
    %v528 = vadd.f32 %v261, %v464
    %v529 = vadd.f32 %v262, %v465
    %v530 = vadd.f32 %v263, %v466
    %v531 = vadd.f32 %v264, %v467
    %v532 = vadd.f32 %v265, %v468
    %v533 = vadd.f32 %v266, %v469
    %v534 = vadd.f32 %v267, %v470
    %v535 = vadd.f32 %v268, %v471
    %v536 = vadd.f32 %v269, %v472
    %v537 = vadd.f32 %v270, %v473
    %v538 = vadd.f32 %v271, %v474
    %v539 = vadd.f32 %v272, %v475
    %v540 = vadd.f32 %v273, %v476
    %v541 = vadd.f32 %v274, %v477
    %v542 = vadd.f32 %v275, %v478
    %v543 = vadd.f32 %v276, %v479
    %v544 = vadd.f32 %v277, %v480
    %v545 = vadd.f32 %v278, %v481
    %v546 = vadd.f32 %v279, %v482
    %v547 = vadd.f32 %v280, %v483
    %v548 = vadd.f32 %v281, %v484
    %v549 = vadd.f32 %v282, %v485
    %v550 = vadd.f32 %v283, %v486
    %v551 = vadd.f32 %v284, %v487
    %v552 = vadd.f32 %v285, %v488
    %v553 = vadd.f32 %v286, %v489
    %v554 = vadd.f32 %v287, %v490
    %v555 = vadd.f32 %v288, %v491
    %v556 = vadd.f32 %v289, %v492
    %v557 = vadd.f32 %v290, %v493
    %v558 = vadd.f32 %v291, %v494
    %v559 = vadd.f32 %v292, %v495
    %v560 = vadd.f32 %v293, %v496
    %v561 = vadd.f32 %v294, %v497
    %v562 = vadd.f32 %v295, %v498
    %v563 = vadd.f32 %v296, %v499
    %v564 = vadd.f32 %v297, %v500
    %v565 = vadd.f32 %v298, %v501
    %v566 = vadd.f32 %v299, %v502
    %v567 = vadd.f32 %v300, %v503
    %v568 = vadd.f32 %v301, %v504
    %v569 = vadd.f32 %v302, %v505
    %v570 = vadd.f32 %v303, %v506
    %v571 = vadd.f32 %v304, %v507
    %v572 = vld [vmem:[%s2] sm:$0xff]
    %v573 = vld [vmem:[%s2 + $0x8] sm:$0xff]
    %v574 = vld [vmem:[%s2 + $0x10] sm:$0xff]
    %v575 = vld [vmem:[%s2 + $0x18] sm:$0xff]
    %v576 = vld [vmem:[%s2 + $0x20] sm:$0xff]
    %v577 = vld [vmem:[%s2 + $0x28] sm:$0xff]
    %v578 = vld [vmem:[%s2 + $0x30] sm:$0xff]
    %v579 = vld [vmem:[%s2 + $0x38] sm:$0xff]
    %v580 = vld [vmem:[%s2 + $0x40] sm:$0xff]
    %v581 = vld [vmem:[%s2 + $0x48] sm:$0xff]
    %v582 = vld [vmem:[%s2 + $0x50] sm:$0xff]
    %v583 = vld [vmem:[%s2 + $0x58] sm:$0xff]
    %v584 = vld [vmem:[%s2 + $0x60] sm:$0xff]
    %v585 = vld [vmem:[%s2 + $0x68] sm:$0xff]
    %v586 = vld [vmem:[%s2 + $0x70] sm:$0xff]
    %v587 = vld [vmem:[%s2 + $0x78] sm:$0xff]
    %v588 = vld [vmem:[%s2 + $0x80] sm:$0xff]
    %v589 = vld [vmem:[%s2 + $0x88] sm:$0xff]
    %v590 = vld [vmem:[%s2 + $0x90] sm:$0xff]
    %v591 = vld [vmem:[%s2 + $0x98] sm:$0xff]
    %v592 = vld [vmem:[%s2 + $0xa0] sm:$0xff]
    %v593 = vld [vmem:[%s2 + $0xa8] sm:$0xff]
    %v594 = vld [vmem:[%s2 + $0xb0] sm:$0xff]
    %v595 = vld [vmem:[%s2 + $0xb8] sm:$0xff]
    %v596 = vld [vmem:[%s2 + $0xc0] sm:$0xff]
    %v597 = vld [vmem:[%s2 + $0xc8] sm:$0xff]
    %v598 = vld [vmem:[%s2 + $0xd0] sm:$0xff]
    %v599 = vld [vmem:[%s2 + $0xd8] sm:$0xff]
    %v600 = vld [vmem:[%s2 + $0xe0] sm:$0xff]
    %v601 = vld [vmem:[%s2 + $0xe8] sm:$0xff]
    %v602 = vld [vmem:[%s2 + $0xf0] sm:$0xff]
    %v603 = vld [vmem:[%s2 + $0xf8] sm:$0xff]
    %605 = vset.pattern.permute.xlu0 0
    %606 = vperm.xlu0 %605, %v572
    %v607 = vpop.permute.xlu0 %606
    %610 = vset.pattern.permute.xlu0 0
    %611 = vperm.xlu0 %610, %v573
    %v612 = vpop.permute.xlu0 %611
    %615 = vset.pattern.permute.xlu0 0
    %616 = vperm.xlu0 %615, %v574
    %v617 = vpop.permute.xlu0 %616
    %620 = vset.pattern.permute.xlu0 0
    %621 = vperm.xlu0 %620, %v575
    %v622 = vpop.permute.xlu0 %621
    %625 = vset.pattern.permute.xlu0 0
    %626 = vperm.xlu0 %625, %v576
    %v627 = vpop.permute.xlu0 %626
    %630 = vset.pattern.permute.xlu0 0
    %631 = vperm.xlu0 %630, %v577
    %v632 = vpop.permute.xlu0 %631
    %635 = vset.pattern.permute.xlu0 0
    %636 = vperm.xlu0 %635, %v578
    %v637 = vpop.permute.xlu0 %636
    %640 = vset.pattern.permute.xlu0 0
    %641 = vperm.xlu0 %640, %v579
    %v642 = vpop.permute.xlu0 %641
    %645 = vset.pattern.permute.xlu0 0
    %646 = vperm.xlu0 %645, %v580
    %v647 = vpop.permute.xlu0 %646
    %650 = vset.pattern.permute.xlu0 0
    %651 = vperm.xlu0 %650, %v581
    %v652 = vpop.permute.xlu0 %651
    %655 = vset.pattern.permute.xlu0 0
    %656 = vperm.xlu0 %655, %v582
    %v657 = vpop.permute.xlu0 %656
    %660 = vset.pattern.permute.xlu0 0
    %661 = vperm.xlu0 %660, %v583
    %v662 = vpop.permute.xlu0 %661
    %665 = vset.pattern.permute.xlu0 0
    %666 = vperm.xlu0 %665, %v584
    %v667 = vpop.permute.xlu0 %666
    %670 = vset.pattern.permute.xlu0 0
    %671 = vperm.xlu0 %670, %v585
    %v672 = vpop.permute.xlu0 %671
    %675 = vset.pattern.permute.xlu0 0
    %676 = vperm.xlu0 %675, %v586
    %v677 = vpop.permute.xlu0 %676
    %680 = vset.pattern.permute.xlu0 0
    %681 = vperm.xlu0 %680, %v587
    %v682 = vpop.permute.xlu0 %681
    %685 = vset.pattern.permute.xlu0 0
    %686 = vperm.xlu0 %685, %v588
    %v687 = vpop.permute.xlu0 %686
    %690 = vset.pattern.permute.xlu0 0
    %691 = vperm.xlu0 %690, %v589
    %v692 = vpop.permute.xlu0 %691
    %695 = vset.pattern.permute.xlu0 0
    %696 = vperm.xlu0 %695, %v590
    %v697 = vpop.permute.xlu0 %696
    %700 = vset.pattern.permute.xlu0 0
    %701 = vperm.xlu0 %700, %v591
    %v702 = vpop.permute.xlu0 %701
    %705 = vset.pattern.permute.xlu0 0
    %706 = vperm.xlu0 %705, %v592
    %v707 = vpop.permute.xlu0 %706
    %710 = vset.pattern.permute.xlu0 0
    %711 = vperm.xlu0 %710, %v593
    %v712 = vpop.permute.xlu0 %711
    %715 = vset.pattern.permute.xlu0 0
    %716 = vperm.xlu0 %715, %v594
    %v717 = vpop.permute.xlu0 %716
    %720 = vset.pattern.permute.xlu0 0
    %721 = vperm.xlu0 %720, %v595
    %v722 = vpop.permute.xlu0 %721
    %725 = vset.pattern.permute.xlu0 0
    %726 = vperm.xlu0 %725, %v596
    %v727 = vpop.permute.xlu0 %726
    %730 = vset.pattern.permute.xlu0 0
    %731 = vperm.xlu0 %730, %v597
    %v732 = vpop.permute.xlu0 %731
    %735 = vset.pattern.permute.xlu0 0
    %736 = vperm.xlu0 %735, %v598
    %v737 = vpop.permute.xlu0 %736
    %740 = vset.pattern.permute.xlu0 0
    %741 = vperm.xlu0 %740, %v599
    %v742 = vpop.permute.xlu0 %741
    %745 = vset.pattern.permute.xlu0 0
    %746 = vperm.xlu0 %745, %v600
    %v747 = vpop.permute.xlu0 %746
    %750 = vset.pattern.permute.xlu0 0
    %751 = vperm.xlu0 %750, %v601
    %v752 = vpop.permute.xlu0 %751
    %755 = vset.pattern.permute.xlu0 0
    %756 = vperm.xlu0 %755, %v602
    %v757 = vpop.permute.xlu0 %756
    %760 = vset.pattern.permute.xlu0 0
    %761 = vperm.xlu0 %760, %v603
    %v762 = vpop.permute.xlu0 %761
    %v764 = vadd.f32 %v508, %v607
    %v765 = vadd.f32 %v509, %v607
    %v766 = vadd.f32 %v510, %v612
    %v767 = vadd.f32 %v511, %v612
    %v768 = vadd.f32 %v512, %v617
    %v769 = vadd.f32 %v513, %v617
    %v770 = vadd.f32 %v514, %v622
    %v771 = vadd.f32 %v515, %v622
    %v772 = vadd.f32 %v516, %v627
    %v773 = vadd.f32 %v517, %v627
    %v774 = vadd.f32 %v518, %v632
    %v775 = vadd.f32 %v519, %v632
    %v776 = vadd.f32 %v520, %v637
    %v777 = vadd.f32 %v521, %v637
    %v778 = vadd.f32 %v522, %v642
    %v779 = vadd.f32 %v523, %v642
    %v780 = vadd.f32 %v524, %v647
    %v781 = vadd.f32 %v525, %v647
    %v782 = vadd.f32 %v526, %v652
    %v783 = vadd.f32 %v527, %v652
    %v784 = vadd.f32 %v528, %v657
    %v785 = vadd.f32 %v529, %v657
    %v786 = vadd.f32 %v530, %v662
    %v787 = vadd.f32 %v531, %v662
    %v788 = vadd.f32 %v532, %v667
    %v789 = vadd.f32 %v533, %v667
    %v790 = vadd.f32 %v534, %v672
    %v791 = vadd.f32 %v535, %v672
    %v792 = vadd.f32 %v536, %v677
    %v793 = vadd.f32 %v537, %v677
    %v794 = vadd.f32 %v538, %v682
    %v795 = vadd.f32 %v539, %v682
    %v796 = vadd.f32 %v540, %v687
    %v797 = vadd.f32 %v541, %v687
    %v798 = vadd.f32 %v542, %v692
    %v799 = vadd.f32 %v543, %v692
    %v800 = vadd.f32 %v544, %v697
    %v801 = vadd.f32 %v545, %v697
    %v802 = vadd.f32 %v546, %v702
    %v803 = vadd.f32 %v547, %v702
    %v804 = vadd.f32 %v548, %v707
    %v805 = vadd.f32 %v549, %v707
    %v806 = vadd.f32 %v550, %v712
    %v807 = vadd.f32 %v551, %v712
    %v808 = vadd.f32 %v552, %v717
    %v809 = vadd.f32 %v553, %v717
    %v810 = vadd.f32 %v554, %v722
    %v811 = vadd.f32 %v555, %v722
    %v812 = vadd.f32 %v556, %v727
    %v813 = vadd.f32 %v557, %v727
    %v814 = vadd.f32 %v558, %v732
    %v815 = vadd.f32 %v559, %v732
    %v816 = vadd.f32 %v560, %v737
    %v817 = vadd.f32 %v561, %v737
    %v818 = vadd.f32 %v562, %v742
    %v819 = vadd.f32 %v563, %v742
    %v820 = vadd.f32 %v564, %v747
    %v821 = vadd.f32 %v565, %v747
    %v822 = vadd.f32 %v566, %v752
    %v823 = vadd.f32 %v567, %v752
    %v824 = vadd.f32 %v568, %v757
    %v825 = vadd.f32 %v569, %v757
    %v826 = vadd.f32 %v570, %v762
    %v827 = vadd.f32 %v571, %v762
    %v828 = vmax.f32 %v764, 0.0
    %v829 = vmax.f32 %v765, 0.0
    %v830 = vmax.f32 %v766, 0.0
    %v831 = vmax.f32 %v767, 0.0
    %v832 = vmax.f32 %v768, 0.0
    %v833 = vmax.f32 %v769, 0.0
    %v834 = vmax.f32 %v770, 0.0
    %v835 = vmax.f32 %v771, 0.0
    %v836 = vmax.f32 %v772, 0.0
    %v837 = vmax.f32 %v773, 0.0
    %v838 = vmax.f32 %v774, 0.0
    %v839 = vmax.f32 %v775, 0.0
    %v840 = vmax.f32 %v776, 0.0
    %v841 = vmax.f32 %v777, 0.0
    %v842 = vmax.f32 %v778, 0.0
    %v843 = vmax.f32 %v779, 0.0
    %v844 = vmax.f32 %v780, 0.0
    %v845 = vmax.f32 %v781, 0.0
    %v846 = vmax.f32 %v782, 0.0
    %v847 = vmax.f32 %v783, 0.0
    %v848 = vmax.f32 %v784, 0.0
    %v849 = vmax.f32 %v785, 0.0
    %v850 = vmax.f32 %v786, 0.0
    %v851 = vmax.f32 %v787, 0.0
    %v852 = vmax.f32 %v788, 0.0
    %v853 = vmax.f32 %v789, 0.0
    %v854 = vmax.f32 %v790, 0.0
    %v855 = vmax.f32 %v791, 0.0
    %v856 = vmax.f32 %v792, 0.0
    %v857 = vmax.f32 %v793, 0.0
    %v858 = vmax.f32 %v794, 0.0
    %v859 = vmax.f32 %v795, 0.0
    %v860 = vmax.f32 %v796, 0.0
    %v861 = vmax.f32 %v797, 0.0
    %v862 = vmax.f32 %v798, 0.0
    %v863 = vmax.f32 %v799, 0.0
    %v864 = vmax.f32 %v800, 0.0
    %v865 = vmax.f32 %v801, 0.0
    %v866 = vmax.f32 %v802, 0.0
    %v867 = vmax.f32 %v803, 0.0
    %v868 = vmax.f32 %v804, 0.0
    %v869 = vmax.f32 %v805, 0.0
    %v870 = vmax.f32 %v806, 0.0
    %v871 = vmax.f32 %v807, 0.0
    %v872 = vmax.f32 %v808, 0.0
    %v873 = vmax.f32 %v809, 0.0
    %v874 = vmax.f32 %v810, 0.0
    %v875 = vmax.f32 %v811, 0.0
    %v876 = vmax.f32 %v812, 0.0
    %v877 = vmax.f32 %v813, 0.0
    %v878 = vmax.f32 %v814, 0.0
    %v879 = vmax.f32 %v815, 0.0
    %v880 = vmax.f32 %v816, 0.0
    %v881 = vmax.f32 %v817, 0.0
    %v882 = vmax.f32 %v818, 0.0
    %v883 = vmax.f32 %v819, 0.0
    %v884 = vmax.f32 %v820, 0.0
    %v885 = vmax.f32 %v821, 0.0
    %v886 = vmax.f32 %v822, 0.0
    %v887 = vmax.f32 %v823, 0.0
    %v888 = vmax.f32 %v824, 0.0
    %v889 = vmax.f32 %v825, 0.0
    %v890 = vmax.f32 %v826, 0.0
    %v891 = vmax.f32 %v827, 0.0
    %v892 = vld [vmem:[%s3] sm:$0xff]
    %v893 = vld [vmem:[%s3 + $0x8] sm:$0xff]
    %v894 = vld [vmem:[%s3 + $0x10] sm:$0xff]
    %v895 = vld [vmem:[%s3 + $0x18] sm:$0xff]
    %v896 = vld [vmem:[%s3 + $0x20] sm:$0xff]
    %v897 = vld [vmem:[%s3 + $0x28] sm:$0xff]
    %v898 = vld [vmem:[%s3 + $0x30] sm:$0xff]
    %v899 = vld [vmem:[%s3 + $0x38] sm:$0xff]
    %v900 = vld [vmem:[%s3 + $0x40] sm:$0xff]
    %v901 = vld [vmem:[%s3 + $0x48] sm:$0xff]
    %v902 = vld [vmem:[%s3 + $0x50] sm:$0xff]
    %v903 = vld [vmem:[%s3 + $0x58] sm:$0xff]
    %v904 = vld [vmem:[%s3 + $0x60] sm:$0xff]
    %v905 = vld [vmem:[%s3 + $0x68] sm:$0xff]
    %v906 = vld [vmem:[%s3 + $0x70] sm:$0xff]
    %v907 = vld [vmem:[%s3 + $0x78] sm:$0xff]
    %v908 = vld [vmem:[%s3 + $0x80] sm:$0xff]
    %v909 = vld [vmem:[%s3 + $0x88] sm:$0xff]
    %v910 = vld [vmem:[%s3 + $0x90] sm:$0xff]
    %v911 = vld [vmem:[%s3 + $0x98] sm:$0xff]
    %v912 = vld [vmem:[%s3 + $0xa0] sm:$0xff]
    %v913 = vld [vmem:[%s3 + $0xa8] sm:$0xff]
    %v914 = vld [vmem:[%s3 + $0xb0] sm:$0xff]
    %v915 = vld [vmem:[%s3 + $0xb8] sm:$0xff]
    %v916 = vld [vmem:[%s3 + $0xc0] sm:$0xff]
    %v917 = vld [vmem:[%s3 + $0xc8] sm:$0xff]
    %v918 = vld [vmem:[%s3 + $0xd0] sm:$0xff]
    %v919 = vld [vmem:[%s3 + $0xd8] sm:$0xff]
    %v920 = vld [vmem:[%s3 + $0xe0] sm:$0xff]
    %v921 = vld [vmem:[%s3 + $0xe8] sm:$0xff]
    %v922 = vld [vmem:[%s3 + $0xf0] sm:$0xff]
    %v923 = vld [vmem:[%s3 + $0xf8] sm:$0xff]
    %v924 = vld [vmem:[%s4] sm:$0xff]
    %v925 = vld [vmem:[%s4 + $0x8] sm:$0xff]
    %v926 = vld [vmem:[%s4 + $0x10] sm:$0xff]
    %v927 = vld [vmem:[%s4 + $0x18] sm:$0xff]
    %v928 = vld [vmem:[%s4 + $0x20] sm:$0xff]
    %v929 = vld [vmem:[%s4 + $0x28] sm:$0xff]
    %v930 = vld [vmem:[%s4 + $0x30] sm:$0xff]
    %v931 = vld [vmem:[%s4 + $0x38] sm:$0xff]
    %v932 = vld [vmem:[%s4 + $0x40] sm:$0xff]
    %v933 = vld [vmem:[%s4 + $0x48] sm:$0xff]
    %v934 = vld [vmem:[%s4 + $0x50] sm:$0xff]
    %v935 = vld [vmem:[%s4 + $0x58] sm:$0xff]
    %v936 = vld [vmem:[%s4 + $0x60] sm:$0xff]
    %v937 = vld [vmem:[%s4 + $0x68] sm:$0xff]
    %v938 = vld [vmem:[%s4 + $0x70] sm:$0xff]
    %v939 = vld [vmem:[%s4 + $0x78] sm:$0xff]
    %941 = vset.pattern.permute.xlu0 0
    %942 = vperm.xlu0 %941, %v924
    %v943 = vpop.permute.xlu0 %942
    %946 = vset.pattern.permute.xlu0 0
    %947 = vperm.xlu0 %946, %v925
    %v948 = vpop.permute.xlu0 %947
    %951 = vset.pattern.permute.xlu0 0
    %952 = vperm.xlu0 %951, %v926
    %v953 = vpop.permute.xlu0 %952
    %956 = vset.pattern.permute.xlu0 0
    %957 = vperm.xlu0 %956, %v927
    %v958 = vpop.permute.xlu0 %957
    %961 = vset.pattern.permute.xlu0 0
    %962 = vperm.xlu0 %961, %v928
    %v963 = vpop.permute.xlu0 %962
    %966 = vset.pattern.permute.xlu0 0
    %967 = vperm.xlu0 %966, %v929
    %v968 = vpop.permute.xlu0 %967
    %971 = vset.pattern.permute.xlu0 0
    %972 = vperm.xlu0 %971, %v930
    %v973 = vpop.permute.xlu0 %972
    %976 = vset.pattern.permute.xlu0 0
    %977 = vperm.xlu0 %976, %v931
    %v978 = vpop.permute.xlu0 %977
    %981 = vset.pattern.permute.xlu0 0
    %982 = vperm.xlu0 %981, %v932
    %v983 = vpop.permute.xlu0 %982
    %986 = vset.pattern.permute.xlu0 0
    %987 = vperm.xlu0 %986, %v933
    %v988 = vpop.permute.xlu0 %987
    %991 = vset.pattern.permute.xlu0 0
    %992 = vperm.xlu0 %991, %v934
    %v993 = vpop.permute.xlu0 %992
    %996 = vset.pattern.permute.xlu0 0
    %997 = vperm.xlu0 %996, %v935
    %v998 = vpop.permute.xlu0 %997
    %1001 = vset.pattern.permute.xlu0 0
    %1002 = vperm.xlu0 %1001, %v936
    %v1003 = vpop.permute.xlu0 %1002
    %1006 = vset.pattern.permute.xlu0 0
    %1007 = vperm.xlu0 %1006, %v937
    %v1008 = vpop.permute.xlu0 %1007
    %1011 = vset.pattern.permute.xlu0 0
    %1012 = vperm.xlu0 %1011, %v938
    %v1013 = vpop.permute.xlu0 %1012
    %1016 = vset.pattern.permute.xlu0 0
    %1017 = vperm.xlu0 %1016, %v939
    %v1018 = vpop.permute.xlu0 %1017
    %1020 = vmatprep.subr.mxu0 %v859
    %1021 = vmatpush1.msra.mxu0 %v858
    %1022 = vmatprep.subr.mxu0 %v857
    %1023 = vmatpush1.msra.mxu0 %v856
    %1024 = vmatprep.subr.mxu0 %v855
    %1025 = vmatpush1.msra.mxu0 %v854
    %1026 = vmatprep.subr.mxu0 %v853
    %1027 = vmatpush1.msra.mxu0 %v852
    %1028 = vmatprep.subr.mxu0 %v851
    %1029 = vmatpush1.msra.mxu0 %v850
    %1030 = vmatprep.subr.mxu0 %v849
    %1031 = vmatpush1.msra.mxu0 %v848
    %1032 = vmatprep.subr.mxu0 %v847
    %1033 = vmatpush1.msra.mxu0 %v846
    %1034 = vmatprep.subr.mxu0 %v845
    %1035 = vmatpush1.msra.mxu0 %v844
    %1036 = vmatprep.subr.mxu0 %v843
    %1037 = vmatpush1.msra.mxu0 %v842
    %1038 = vmatprep.subr.mxu0 %v841
    %1039 = vmatpush1.msra.mxu0 %v840
    %1040 = vmatprep.subr.mxu0 %v839
    %1041 = vmatpush1.msra.mxu0 %v838
    %1042 = vmatprep.subr.mxu0 %v837
    %1043 = vmatpush1.msra.mxu0 %v836
    %1044 = vmatprep.subr.mxu0 %v835
    %1045 = vmatpush1.msra.mxu0 %v834
    %1046 = vmatprep.subr.mxu0 %v833
    %1047 = vmatpush1.msra.mxu0 %v832
    %1048 = vmatprep.subr.mxu0 %v831
    %1049 = vmatpush1.msra.mxu0 %v830
    %1050 = vmatprep.subr.mxu0 %v829
    %1051 = vmatpush1.msra.mxu0 %v828
    %1052 = vmatprep.subr.mxu0 %v891
    %1053 = vmatpush2.msra.mxu0 %v890
    %1054 = vmatprep.subr.mxu0 %v889
    %1055 = vmatpush2.msra.mxu0 %v888
    %1056 = vmatprep.subr.mxu0 %v887
    %1057 = vmatpush2.msra.mxu0 %v886
    %1058 = vmatprep.subr.mxu0 %v885
    %1059 = vmatpush2.msra.mxu0 %v884
    %1060 = vmatprep.subr.mxu0 %v883
    %1061 = vmatpush2.msra.mxu0 %v882
    %1062 = vmatprep.subr.mxu0 %v881
    %1063 = vmatpush2.msra.mxu0 %v880
    %1064 = vmatprep.subr.mxu0 %v879
    %1065 = vmatpush2.msra.mxu0 %v878
    %1066 = vmatprep.subr.mxu0 %v877
    %1067 = vmatpush2.msra.mxu0 %v876
    %1068 = vmatprep.subr.mxu0 %v875
    %1069 = vmatpush2.msra.mxu0 %v874
    %1070 = vmatprep.subr.mxu0 %v873
    %1071 = vmatpush2.msra.mxu0 %v872
    %1072 = vmatprep.subr.mxu0 %v871
    %1073 = vmatpush2.msra.mxu0 %v870
    %1074 = vmatprep.subr.mxu0 %v869
    %1075 = vmatpush2.msra.mxu0 %v868
    %1076 = vmatprep.subr.mxu0 %v867
    %1077 = vmatpush2.msra.mxu0 %v866
    %1078 = vmatprep.subr.mxu0 %v865
    %1079 = vmatpush2.msra.mxu0 %v864
    %1080 = vmatprep.subr.mxu0 %v863
    %1081 = vmatpush2.msra.mxu0 %v862
    %1082 = vmatprep.subr.mxu0 %v861
    %1083 = vmatpush2.msra.mxu0 %v860
    %1084 = vmatprep.mubr.f32.mxu0 %v893
    %1085 = vmatmul.mubr.f32.gmra.mxu0 %v892
    %v1086 = vpop.f32.mrf.mxu0
    %v1087 = vadd.f32 %v943, %v1086
    %v1088 = vpop.f32.mrf.mxu0
    %v1089 = vadd.f32 %v943, %v1088
    %1090 = vmatprep.mubr.f32.mxu0 %v895
    %1091 = vmatmul.mubr.f32.gmra.mxu0 %v894
    %v1092 = vpop.f32.mrf.mxu0
    %v1093 = vadd.f32 %v948, %v1092
    %v1094 = vpop.f32.mrf.mxu0
    %v1095 = vadd.f32 %v948, %v1094
    %1096 = vmatprep.mubr.f32.mxu0 %v897
    %1097 = vmatmul.mubr.f32.gmra.mxu0 %v896
    %v1098 = vpop.f32.mrf.mxu0
    %v1099 = vadd.f32 %v953, %v1098
    %v1100 = vpop.f32.mrf.mxu0
    %v1101 = vadd.f32 %v953, %v1100
    %1102 = vmatprep.mubr.f32.mxu0 %v899
    %1103 = vmatmul.mubr.f32.gmra.mxu0 %v898
    %v1104 = vpop.f32.mrf.mxu0
    %v1105 = vadd.f32 %v958, %v1104
    %v1106 = vpop.f32.mrf.mxu0
    %v1107 = vadd.f32 %v958, %v1106
    %1108 = vmatprep.mubr.f32.mxu0 %v901
    %1109 = vmatmul.mubr.f32.gmra.mxu0 %v900
    %v1110 = vpop.f32.mrf.mxu0
    %v1111 = vadd.f32 %v963, %v1110
    %v1112 = vpop.f32.mrf.mxu0
    %v1113 = vadd.f32 %v963, %v1112
    %1114 = vmatprep.mubr.f32.mxu0 %v903
    %1115 = vmatmul.mubr.f32.gmra.mxu0 %v902
    %v1116 = vpop.f32.mrf.mxu0
    %v1117 = vadd.f32 %v968, %v1116
    %v1118 = vpop.f32.mrf.mxu0
    %v1119 = vadd.f32 %v968, %v1118
    %1120 = vmatprep.mubr.f32.mxu0 %v905
    %1121 = vmatmul.mubr.f32.gmra.mxu0 %v904
    %v1122 = vpop.f32.mrf.mxu0
    %v1123 = vadd.f32 %v973, %v1122
    %v1124 = vpop.f32.mrf.mxu0
    %v1125 = vadd.f32 %v973, %v1124
    %1126 = vmatprep.mubr.f32.mxu0 %v907
    %1127 = vmatmul.mubr.f32.gmra.mxu0 %v906
    %v1128 = vpop.f32.mrf.mxu0
    %v1129 = vadd.f32 %v978, %v1128
    %v1130 = vpop.f32.mrf.mxu0
    %v1131 = vadd.f32 %v978, %v1130
    %1132 = vmatprep.mubr.f32.mxu0 %v909
    %1133 = vmatmul.mubr.f32.gmra.mxu0 %v908
    %v1134 = vpop.f32.mrf.mxu0
    %v1135 = vadd.f32 %v983, %v1134
    %v1136 = vpop.f32.mrf.mxu0
    %v1137 = vadd.f32 %v983, %v1136
    %1138 = vmatprep.mubr.f32.mxu0 %v911
    %1139 = vmatmul.mubr.f32.gmra.mxu0 %v910
    %v1140 = vpop.f32.mrf.mxu0
    %v1141 = vadd.f32 %v988, %v1140
    %v1142 = vpop.f32.mrf.mxu0
    %v1143 = vadd.f32 %v988, %v1142
    %1144 = vmatprep.mubr.f32.mxu0 %v913
    %1145 = vmatmul.mubr.f32.gmra.mxu0 %v912
    %v1146 = vpop.f32.mrf.mxu0
    %v1147 = vadd.f32 %v993, %v1146
    %v1148 = vpop.f32.mrf.mxu0
    %v1149 = vadd.f32 %v993, %v1148
    %1150 = vmatprep.mubr.f32.mxu0 %v915
    %1151 = vmatmul.mubr.f32.gmra.mxu0 %v914
    %v1152 = vpop.f32.mrf.mxu0
    %v1153 = vadd.f32 %v998, %v1152
    %v1154 = vpop.f32.mrf.mxu0
    %v1155 = vadd.f32 %v998, %v1154
    %1156 = vmatprep.mubr.f32.mxu0 %v917
    %1157 = vmatmul.mubr.f32.gmra.mxu0 %v916
    %v1158 = vpop.f32.mrf.mxu0
    %v1159 = vadd.f32 %v1003, %v1158
    %v1160 = vpop.f32.mrf.mxu0
    %v1161 = vadd.f32 %v1003, %v1160
    %1162 = vmatprep.mubr.f32.mxu0 %v919
    %1163 = vmatmul.mubr.f32.gmra.mxu0 %v918
    %v1164 = vpop.f32.mrf.mxu0
    %v1165 = vadd.f32 %v1008, %v1164
    %v1166 = vpop.f32.mrf.mxu0
    %v1167 = vadd.f32 %v1008, %v1166
    %1168 = vmatprep.mubr.f32.mxu0 %v921
    %1169 = vmatmul.mubr.f32.gmra.mxu0 %v920
    %v1170 = vpop.f32.mrf.mxu0
    %v1171 = vadd.f32 %v1013, %v1170
    %v1172 = vpop.f32.mrf.mxu0
    %v1173 = vadd.f32 %v1013, %v1172
    %1174 = vmatprep.mubr.f32.mxu0 %v923
    %1175 = vmatmul.mubr.f32.gmra.mxu0 %v922
    %v1176 = vpop.f32.mrf.mxu0
    %v1177 = vadd.f32 %v1018, %v1176
    %v1178 = vpop.f32.mrf.mxu0
    %v1179 = vadd.f32 %v1018, %v1178
    %1180 = vdwg.mxu0
    %v1181 = vmax.f32 %v1087, 0.0
    %v1182 = vmax.f32 %v1089, 0.0
    %v1183 = vmax.f32 %v1093, 0.0
    %v1184 = vmax.f32 %v1095, 0.0
    %v1185 = vmax.f32 %v1099, 0.0
    %v1186 = vmax.f32 %v1101, 0.0
    %v1187 = vmax.f32 %v1105, 0.0
    %v1188 = vmax.f32 %v1107, 0.0
    %v1189 = vmax.f32 %v1111, 0.0
    %v1190 = vmax.f32 %v1113, 0.0
    %v1191 = vmax.f32 %v1117, 0.0
    %v1192 = vmax.f32 %v1119, 0.0
    %v1193 = vmax.f32 %v1123, 0.0
    %v1194 = vmax.f32 %v1125, 0.0
    %v1195 = vmax.f32 %v1129, 0.0
    %v1196 = vmax.f32 %v1131, 0.0
    %v1197 = vmax.f32 %v1135, 0.0
    %v1198 = vmax.f32 %v1137, 0.0
    %v1199 = vmax.f32 %v1141, 0.0
    %v1200 = vmax.f32 %v1143, 0.0
    %v1201 = vmax.f32 %v1147, 0.0
    %v1202 = vmax.f32 %v1149, 0.0
    %v1203 = vmax.f32 %v1153, 0.0
    %v1204 = vmax.f32 %v1155, 0.0
    %v1205 = vmax.f32 %v1159, 0.0
    %v1206 = vmax.f32 %v1161, 0.0
    %v1207 = vmax.f32 %v1165, 0.0
    %v1208 = vmax.f32 %v1167, 0.0
    %v1209 = vmax.f32 %v1171, 0.0
    %v1210 = vmax.f32 %v1173, 0.0
    %v1211 = vmax.f32 %v1177, 0.0
    %v1212 = vmax.f32 %v1179, 0.0
    %v1213 = vld [vmem:[%s5] sm:$0xff]
    %v1214 = vld [vmem:[%s5 + $0x8] sm:$0xff]
    %v1215 = vld [vmem:[%s5 + $0x10] sm:$0xff]
    %v1216 = vld [vmem:[%s5 + $0x18] sm:$0xff]
    %v1217 = vld [vmem:[%s5 + $0x20] sm:$0xff]
    %v1218 = vld [vmem:[%s5 + $0x28] sm:$0xff]
    %v1219 = vld [vmem:[%s5 + $0x30] sm:$0xff]
    %v1220 = vld [vmem:[%s5 + $0x38] sm:$0xff]
    %v1221 = vld [vmem:[%s6] sm:$0xff]
    %v1222 = vld [vmem:[%s6 + $0x8] sm:$0xff]
    %v1223 = vld [vmem:[%s6 + $0x10] sm:$0xff]
    %v1224 = vld [vmem:[%s6 + $0x18] sm:$0xff]
    %v1225 = vld [vmem:[%s6 + $0x20] sm:$0xff]
    %v1226 = vld [vmem:[%s6 + $0x28] sm:$0xff]
    %v1227 = vld [vmem:[%s6 + $0x30] sm:$0xff]
    %v1228 = vld [vmem:[%s6 + $0x38] sm:$0xff]
    %1230 = vset.pattern.permute.xlu0 0
    %1231 = vperm.xlu0 %1230, %v1221
    %v1232 = vpop.permute.xlu0 %1231
    %1235 = vset.pattern.permute.xlu0 0
    %1236 = vperm.xlu0 %1235, %v1222
    %v1237 = vpop.permute.xlu0 %1236
    %1240 = vset.pattern.permute.xlu0 0
    %1241 = vperm.xlu0 %1240, %v1223
    %v1242 = vpop.permute.xlu0 %1241
    %1245 = vset.pattern.permute.xlu0 0
    %1246 = vperm.xlu0 %1245, %v1224
    %v1247 = vpop.permute.xlu0 %1246
    %1250 = vset.pattern.permute.xlu0 0
    %1251 = vperm.xlu0 %1250, %v1225
    %v1252 = vpop.permute.xlu0 %1251
    %1255 = vset.pattern.permute.xlu0 0
    %1256 = vperm.xlu0 %1255, %v1226
    %v1257 = vpop.permute.xlu0 %1256
    %1260 = vset.pattern.permute.xlu0 0
    %1261 = vperm.xlu0 %1260, %v1227
    %v1262 = vpop.permute.xlu0 %1261
    %1265 = vset.pattern.permute.xlu0 0
    %1266 = vperm.xlu0 %1265, %v1228
    %v1267 = vpop.permute.xlu0 %1266
    %1269 = vmatprep.subr.mxu0 %v1212
    %1270 = vmatpush1.msra.mxu0 %v1211
    %1271 = vmatprep.subr.mxu0 %v1210
    %1272 = vmatpush1.msra.mxu0 %v1209
    %1273 = vmatprep.subr.mxu0 %v1208
    %1274 = vmatpush1.msra.mxu0 %v1207
    %1275 = vmatprep.subr.mxu0 %v1206
    %1276 = vmatpush1.msra.mxu0 %v1205
    %1277 = vmatprep.subr.mxu0 %v1204
    %1278 = vmatpush1.msra.mxu0 %v1203
    %1279 = vmatprep.subr.mxu0 %v1202
    %1280 = vmatpush1.msra.mxu0 %v1201
    %1281 = vmatprep.subr.mxu0 %v1200
    %1282 = vmatpush1.msra.mxu0 %v1199
    %1283 = vmatprep.subr.mxu0 %v1198
    %1284 = vmatpush1.msra.mxu0 %v1197
    %1285 = vmatprep.subr.mxu0 %v1196
    %1286 = vmatpush1.msra.mxu0 %v1195
    %1287 = vmatprep.subr.mxu0 %v1194
    %1288 = vmatpush1.msra.mxu0 %v1193
    %1289 = vmatprep.subr.mxu0 %v1192
    %1290 = vmatpush1.msra.mxu0 %v1191
    %1291 = vmatprep.subr.mxu0 %v1190
    %1292 = vmatpush1.msra.mxu0 %v1189
    %1293 = vmatprep.subr.mxu0 %v1188
    %1294 = vmatpush1.msra.mxu0 %v1187
    %1295 = vmatprep.subr.mxu0 %v1186
    %1296 = vmatpush1.msra.mxu0 %v1185
    %1297 = vmatprep.subr.mxu0 %v1184
    %1298 = vmatpush1.msra.mxu0 %v1183
    %1299 = vmatprep.subr.mxu0 %v1182
    %1300 = vmatpush1.msra.mxu0 %v1181
    %1301 = vmatprep.subr.mxu0 0.0
    %1302 = vmatpush2.msra.mxu0 0.0
    %1303 = vmatprep.subr.mxu0 0.0
    %1304 = vmatpush2.msra.mxu0 0.0
    %1305 = vmatprep.subr.mxu0 0.0
    %1306 = vmatpush2.msra.mxu0 0.0
    %1307 = vmatprep.subr.mxu0 0.0
    %1308 = vmatpush2.msra.mxu0 0.0
    %1309 = vmatprep.subr.mxu0 0.0
    %1310 = vmatpush2.msra.mxu0 0.0
    %1311 = vmatprep.subr.mxu0 0.0
    %1312 = vmatpush2.msra.mxu0 0.0
    %1313 = vmatprep.subr.mxu0 0.0
    %1314 = vmatpush2.msra.mxu0 0.0
    %1315 = vmatprep.subr.mxu0 0.0
    %1316 = vmatpush2.msra.mxu0 0.0
    %1317 = vmatprep.subr.mxu0 0.0
    %1318 = vmatpush2.msra.mxu0 0.0
    %1319 = vmatprep.subr.mxu0 0.0
    %1320 = vmatpush2.msra.mxu0 0.0
    %1321 = vmatprep.subr.mxu0 0.0
    %1322 = vmatpush2.msra.mxu0 0.0
    %1323 = vmatprep.subr.mxu0 0.0
    %1324 = vmatpush2.msra.mxu0 0.0
    %1325 = vmatprep.subr.mxu0 0.0
    %1326 = vmatpush2.msra.mxu0 0.0
    %1327 = vmatprep.subr.mxu0 0.0
    %1328 = vmatpush2.msra.mxu0 0.0
    %1329 = vmatprep.subr.mxu0 0.0
    %1330 = vmatpush2.msra.mxu0 0.0
    %1331 = vmatprep.subr.mxu0 0.0
    %1332 = vmatpush2.msra.mxu0 0.0
    %1333 = vmatprep.mubr.f32.mxu0 0.0
    %1334 = vmatmul.mubr.f32.gmra.mxu0 %v1213
    %v1335 = vpop.f32.mrf.mxu0
    %v1336 = vadd.f32 %v1232, %v1335
    %v1337 = vpop.f32.mrf.mxu0
    %v1338 = vadd.f32 %v1232, %v1337
    %1339 = vmatprep.mubr.f32.mxu0 0.0
    %1340 = vmatmul.mubr.f32.gmra.mxu0 %v1214
    %v1341 = vpop.f32.mrf.mxu0
    %v1342 = vadd.f32 %v1237, %v1341
    %v1343 = vpop.f32.mrf.mxu0
    %v1344 = vadd.f32 %v1237, %v1343
    %1345 = vmatprep.mubr.f32.mxu0 0.0
    %1346 = vmatmul.mubr.f32.gmra.mxu0 %v1215
    %v1347 = vpop.f32.mrf.mxu0
    %v1348 = vadd.f32 %v1242, %v1347
    %v1349 = vpop.f32.mrf.mxu0
    %v1350 = vadd.f32 %v1242, %v1349
    %1351 = vmatprep.mubr.f32.mxu0 0.0
    %1352 = vmatmul.mubr.f32.gmra.mxu0 %v1216
    %v1353 = vpop.f32.mrf.mxu0
    %v1354 = vadd.f32 %v1247, %v1353
    %v1355 = vpop.f32.mrf.mxu0
    %v1356 = vadd.f32 %v1247, %v1355
    %1357 = vmatprep.mubr.f32.mxu0 0.0
    %1358 = vmatmul.mubr.f32.gmra.mxu0 %v1217
    %v1359 = vpop.f32.mrf.mxu0
    %v1360 = vadd.f32 %v1252, %v1359
    %v1361 = vpop.f32.mrf.mxu0
    %v1362 = vadd.f32 %v1252, %v1361
    %1363 = vmatprep.mubr.f32.mxu0 0.0
    %1364 = vmatmul.mubr.f32.gmra.mxu0 %v1218
    %v1365 = vpop.f32.mrf.mxu0
    %v1366 = vadd.f32 %v1257, %v1365
    %v1367 = vpop.f32.mrf.mxu0
    %v1368 = vadd.f32 %v1257, %v1367
    %1369 = vmatprep.mubr.f32.mxu0 0.0
    %1370 = vmatmul.mubr.f32.gmra.mxu0 %v1219
    %v1371 = vpop.f32.mrf.mxu0
    %v1372 = vadd.f32 %v1262, %v1371
    %v1373 = vpop.f32.mrf.mxu0
    %v1374 = vadd.f32 %v1262, %v1373
    %1375 = vmatprep.mubr.f32.mxu0 0.0
    %1376 = vmatmul.mubr.f32.gmra.mxu0 %v1220
    %v1377 = vpop.f32.mrf.mxu0
    %v1378 = vadd.f32 %v1267, %v1377
    %v1379 = vpop.f32.mrf.mxu0
    %v1380 = vadd.f32 %v1267, %v1379
    %1381 = vdwg.mxu0
    %v1382 = vmax.f32 %v1336, 0.0
    %v1383 = vmax.f32 %v1338, 0.0
    %v1384 = vmax.f32 %v1342, 0.0
    %v1385 = vmax.f32 %v1344, 0.0
    %v1386 = vmax.f32 %v1348, 0.0
    %v1387 = vmax.f32 %v1350, 0.0
    %v1388 = vmax.f32 %v1354, 0.0
    %v1389 = vmax.f32 %v1356, 0.0
    %v1390 = vmax.f32 %v1360, 0.0
    %v1391 = vmax.f32 %v1362, 0.0
    %v1392 = vmax.f32 %v1366, 0.0
    %v1393 = vmax.f32 %v1368, 0.0
    %v1394 = vmax.f32 %v1372, 0.0
    %v1395 = vmax.f32 %v1374, 0.0
    %v1396 = vmax.f32 %v1378, 0.0
    %v1397 = vmax.f32 %v1380, 0.0
    %v1398 = vld [vmem:[%s7] sm:$0xff]
    %v1399 = vld [vmem:[%s7 + $0x8] sm:$0xff]
    %v1400 = vld [vmem:[%s7 + $0x10] sm:$0xff]
    %v1401 = vld [vmem:[%s7 + $0x18] sm:$0xff]
    %v1402 = vld [vmem:[%s7 + $0x20] sm:$0xff]
    %v1403 = vld [vmem:[%s7 + $0x28] sm:$0xff]
    %v1404 = vld [vmem:[%s7 + $0x30] sm:$0xff]
    %v1405 = vld [vmem:[%s7 + $0x38] sm:$0xff]
    %1407 = vset.pattern.permute.xlu0 0
    %1408 = vperm.xlu0 %1407, %v1398
    %v1409 = vpop.permute.xlu0 %1408
    %1412 = vset.pattern.permute.xlu0 0
    %1413 = vperm.xlu0 %1412, %v1399
    %v1414 = vpop.permute.xlu0 %1413
    %1417 = vset.pattern.permute.xlu0 0
    %1418 = vperm.xlu0 %1417, %v1400
    %v1419 = vpop.permute.xlu0 %1418
    %1422 = vset.pattern.permute.xlu0 0
    %1423 = vperm.xlu0 %1422, %v1401
    %v1424 = vpop.permute.xlu0 %1423
    %1427 = vset.pattern.permute.xlu0 0
    %1428 = vperm.xlu0 %1427, %v1402
    %v1429 = vpop.permute.xlu0 %1428
    %1432 = vset.pattern.permute.xlu0 0
    %1433 = vperm.xlu0 %1432, %v1403
    %v1434 = vpop.permute.xlu0 %1433
    %1437 = vset.pattern.permute.xlu0 0
    %1438 = vperm.xlu0 %1437, %v1404
    %v1439 = vpop.permute.xlu0 %1438
    %1442 = vset.pattern.permute.xlu0 0
    %1443 = vperm.xlu0 %1442, %v1405
    %v1444 = vpop.permute.xlu0 %1443
    %v1446 = vmul.f32 %v1409, %v1382
    %v1447 = vmul.f32 %v1409, %v1383
    %v1448 = vmul.f32 %v1414, %v1384
    %v1449 = vmul.f32 %v1414, %v1385
    %v1450 = vmul.f32 %v1419, %v1386
    %v1451 = vmul.f32 %v1419, %v1387
    %v1452 = vmul.f32 %v1424, %v1388
    %v1453 = vmul.f32 %v1424, %v1389
    %v1454 = vmul.f32 %v1429, %v1390
    %v1455 = vmul.f32 %v1429, %v1391
    %v1456 = vmul.f32 %v1434, %v1392
    %v1457 = vmul.f32 %v1434, %v1393
    %v1458 = vmul.f32 %v1439, %v1394
    %v1459 = vmul.f32 %v1439, %v1395
    %v1460 = vmul.f32 %v1444, %v1396
    %v1461 = vmul.f32 %v1444, %v1397
    %v1462 = vadd.f32 %v1446, %v1448
    %v1463 = vadd.f32 %v1462, %v1450
    %v1464 = vadd.f32 %v1463, %v1452
    %v1465 = vadd.f32 %v1464, %v1454
    %v1466 = vadd.f32 %v1465, %v1456
    %v1467 = vadd.f32 %v1466, %v1458
    %v1468 = vadd.f32 %v1467, %v1460
    %v1469 = vrot.slane %v1468, 4
    %v1470 = vadd.f32 %v1468, %v1469
    %v1471 = vrot.slane %v1470, 2
    %v1472 = vadd.f32 %v1470, %v1471
    %v1473 = vrot.slane %v1472, 1
    %v1474 = vadd.f32 %v1472, %v1473
    %v1475 = vadd.f32 %v1447, %v1449
    %v1476 = vadd.f32 %v1475, %v1451
    %v1477 = vadd.f32 %v1476, %v1453
    %v1478 = vadd.f32 %v1477, %v1455
    %v1479 = vadd.f32 %v1478, %v1457
    %v1480 = vadd.f32 %v1479, %v1459
    %v1481 = vadd.f32 %v1480, %v1461
    %v1482 = vrot.slane %v1481, 4
    %v1483 = vadd.f32 %v1481, %v1482
    %v1484 = vrot.slane %v1483, 2
    %v1485 = vadd.f32 %v1483, %v1484
    %v1486 = vrot.slane %v1485, 1
    %v1487 = vadd.f32 %v1485, %v1486
    %v1488 = vld [vmem:[#allocation2] sm:$0x1]
    %1490 = vset.pattern.permute.xlu0 0
    %1491 = vperm.xlu0 %1490, %v1488
    %v1492 = vpop.permute.xlu0 %1491
    %v1494 = vlaneseq
    %v1495 = vshrl.u32 %v1494, 7
    %v1496 = vsub.s32 0, %v1495
    %v1497 = vrot.slane %v1492, %v1496
    %v1498 = vadd.f32 %v1474, %v1497
    %v1499 = vadd.f32 %v1487, %v1497
    %v1500 = vsub.f32 0.0, %v1498
    %v1501 = vsub.f32 0.0, %v1499
    %v1502 = vmul.f32 %v1500, 1.442695
    %v1503 = vpow.pop %v1502
    %v1504 = vmul.f32 %v1501, 1.442695
    %v1505 = vpow.pop %v1504
    %v1506 = vadd.f32 %v1503, 1.0
    %v1507 = vadd.f32 %v1505, 1.0
    %v1508 = vrcp.pop %v1506
    %v1509 = vrcp.pop %v1507
    %v1512 = vcombine.low %v1508, %v1509
    %v1514 = vunpack.c.l.s4 1966171168
    %v1515 = vunpack.c.0.s8 %v1514
    %v1516 = vlaneseq
    %v1517 = vshrl.u32 %v1516, 7
    %v1518 = vsub.s32 %v1515, %v1517
    %v1519 = vrot.slane %v1512, %v1518
    %v1521 = vunpack.c.l.s4 1966171168
    %v1522 = vunpack.c.0.s8 %v1521
    %v1523 = vlaneseq
    %v1524 = vshrl.u32 %v1523, 7
    %v1525 = vsub.s32 %v1522, %v1524
    %v1526 = vrot.slane %v1519, %v1525
    %v1528 = vlaneseq
    %vm1529 = vcmp.ge.s32.totalorder %v1528, 0
    %vm1530 = vcmp.lt.s32.totalorder %v1528, 256
    %vm1531 = vmand %vm1529, %vm1530
    %1532 = vst.msk [vmem:[#allocation3] sm:$0x3] %vm1531, %v1526
    // Predicated region
    $region38: #{tpu_custom_call.1} parent=1 // pred_check
      _
    $region39: #{tpu_custom_call.1} parent=1 // pred_check_branch
      %1534 = sbr.rel (0) target = $region41
    $region40: #{tpu_custom_call.1} parent=1 // pred_region
      %s1536 = ssub.s32 32, 32
      %1537 = vsyncadd [#allocation4], %s1536
      %s1539 = sshll.u32 [#allocation3], 4
      %s1540 = int_to_ptr.vmem [resolvable:$true] %s1539
      %1542 = dma.vmem_to_hbm [thread:$0]  %s1540, 32, %s9, [#allocation4]
    $region41: #{tpu_custom_call.1} parent=1 // pred_fallthru
      _
    // Predicated region
    $region42: #{tpu_custom_call.1} parent=1 // pred_check
      _
    $region43: #{tpu_custom_call.1} parent=1 // pred_check_branch
      %1544 = sbr.rel (0) target = $region45
    $region44: #{tpu_custom_call.1} parent=1 // pred_region
      %1545 = dma.done [#allocation4], 32
    $region45: #{tpu_custom_call.1} parent=1 // pred_fallthru
      _
    %1546 = vsyncpa [#allocation4], 1

// kernel: tpu_custom_call.1
$region0: #{tpu_custom_call.1}
  #allocation0 [shape = 'u32[]', space=smem, size = 0x4, offset = 0x4, fixed_abs, tag = 'smem constant byte address 0x4 - core index']
  #allocation1 [shape = 'u32[144,128]{1,0:T(1,128)}', space=vmem, size = 0x12000, scoped, tag = 'internal scratch']
  #allocation2 [shape = 'f32[1,1]{1,0:T(1,128)S(1)}', space=vmem, size = 0x200, scoped, tag = 'scoped memory for tpu_custom_call.1']
  %s0 = inlined_call_operand.vmem [shape: f32[2,256], index: 0, kind: input, shape index: {}]
  %s1 = inlined_call_operand.vmem [shape: f32[256,2], index: 1, kind: input, shape index: {}]
  %s2 = inlined_call_operand.vmem [shape: f32[256,1], index: 2, kind: input, shape index: {}]
  %s3 = inlined_call_operand.vmem [shape: f32[128,256], index: 3, kind: input, shape index: {}]
  %s4 = inlined_call_operand.vmem [shape: f32[128,1], index: 4, kind: input, shape index: {}]
  %s5 = inlined_call_operand.vmem [shape: f32[64,128], index: 5, kind: input, shape index: {}]
  %s6 = inlined_call_operand.vmem [shape: f32[64,1], index: 6, kind: input, shape index: {}]
  %s7 = inlined_call_operand.vmem [shape: f32[64,1], index: 7, kind: input, shape index: {}]
  %s8 = inlined_call_operand.<no memory space> [shape: f32[1,1], index: 8, kind: input, shape index: {}]
  %s9 = inlined_call_operand.hbm [shape: f32[1,256], index: 9, kind: output, shape index: {}]
  %s10 = sld [smem:[#allocation0]]
  $region46: #{tpu_custom_call.1} parent=0
    _
  %s12 = ssub.s32 1, %s10
  %s13 = scalar_select 0, %s12, %s10
  %v14 = vstv %s8
  %15 = vst [vmem:[#allocation2] sm:$0x1] %v14
  $region1: #{tpu_custom_call.1} parent=0
    #allocation3 [shape = 'u8[1024]{0}', space=vmem, size = 0x400, scoped, tag = 'output window, operand 0, single buffered']
    #allocation4 [shape = 's32[1]{0}', space=sflag, size = 0x4, scoped, tag = 'scoped memory for tpu_custom_call.1']
    %16 = vsyncpa [#allocation4], 0
    // Predicated region
    $region2: #{tpu_custom_call.1} parent=1 // pred_check
      _
    $region3: #{tpu_custom_call.1} parent=1 // pred_check_branch
      %18 = sbr.rel (0) target = $region5
    $region4: #{tpu_custom_call.1} parent=1 // pred_region
      _
    $region5: #{tpu_custom_call.1} parent=1 // pred_fallthru
      _
    // Predicated region
    $region6: #{tpu_custom_call.1} parent=1 // pred_check
      _
    $region7: #{tpu_custom_call.1} parent=1 // pred_check_branch
      %20 = sbr.rel (0) target = $region9
    $region8: #{tpu_custom_call.1} parent=1 // pred_region
      _
    $region9: #{tpu_custom_call.1} parent=1 // pred_fallthru
      _
    // Predicated region
    $region10: #{tpu_custom_call.1} parent=1 // pred_check
      _
    $region11: #{tpu_custom_call.1} parent=1 // pred_check_branch
      %22 = sbr.rel (0) target = $region13
    $region12: #{tpu_custom_call.1} parent=1 // pred_region
      _
    $region13: #{tpu_custom_call.1} parent=1 // pred_fallthru
      _
    // Predicated region
    $region14: #{tpu_custom_call.1} parent=1 // pred_check
      _
    $region15: #{tpu_custom_call.1} parent=1 // pred_check_branch
      %24 = sbr.rel (0) target = $region17
    $region16: #{tpu_custom_call.1} parent=1 // pred_region
      _
    $region17: #{tpu_custom_call.1} parent=1 // pred_fallthru
      _
    // Predicated region
    $region18: #{tpu_custom_call.1} parent=1 // pred_check
      _
    $region19: #{tpu_custom_call.1} parent=1 // pred_check_branch
      %26 = sbr.rel (0) target = $region21
    $region20: #{tpu_custom_call.1} parent=1 // pred_region
      _
    $region21: #{tpu_custom_call.1} parent=1 // pred_fallthru
      _
    // Predicated region
    $region22: #{tpu_custom_call.1} parent=1 // pred_check
      _
    $region23: #{tpu_custom_call.1} parent=1 // pred_check_branch
      %28 = sbr.rel (0) target = $region25
    $region24: #{tpu_custom_call.1} parent=1 // pred_region
      _
    $region25: #{tpu_custom_call.1} parent=1 // pred_fallthru
      _
    // Predicated region
    $region26: #{tpu_custom_call.1} parent=1 // pred_check
      _
    $region27: #{tpu_custom_call.1} parent=1 // pred_check_branch
      %30 = sbr.rel (0) target = $region29
    $region28: #{tpu_custom_call.1} parent=1 // pred_region
      _
    $region29: #{tpu_custom_call.1} parent=1 // pred_fallthru
      _
    // Predicated region
    $region30: #{tpu_custom_call.1} parent=1 // pred_check
      _
    $region31: #{tpu_custom_call.1} parent=1 // pred_check_branch
      %32 = sbr.rel (0) target = $region33
    $region32: #{tpu_custom_call.1} parent=1 // pred_region
      _
    $region33: #{tpu_custom_call.1} parent=1 // pred_fallthru
      _
    // Predicated region
    $region34: #{tpu_custom_call.1} parent=1 // pred_check
      _
    $region35: #{tpu_custom_call.1} parent=1 // pred_check_branch
      %34 = sbr.rel (0) target = $region37
    $region36: #{tpu_custom_call.1} parent=1 // pred_region
      _
    $region37: #{tpu_custom_call.1} parent=1 // pred_fallthru
      _
    %v35 = vld [vmem:[%s0] ss:$2 sm:$0x3]
    %s36 = scalar_lea.vmem %s0, 1
    %v37 = vld [vmem:[%s36] ss:$2 sm:$0x3]
    %v38 = vld [vmem:[%s1] sm:$0xff]
    %v39 = vld [vmem:[%s1 + $0x8] sm:$0xff]
    %v40 = vld [vmem:[%s1 + $0x10] sm:$0xff]
    %v41 = vld [vmem:[%s1 + $0x18] sm:$0xff]
    %v42 = vld [vmem:[%s1 + $0x20] sm:$0xff]
    %v43 = vld [vmem:[%s1 + $0x28] sm:$0xff]
    %v44 = vld [vmem:[%s1 + $0x30] sm:$0xff]
    %v45 = vld [vmem:[%s1 + $0x38] sm:$0xff]
    %v46 = vld [vmem:[%s1 + $0x40] sm:$0xff]
    %v47 = vld [vmem:[%s1 + $0x48] sm:$0xff]
    %v48 = vld [vmem:[%s1 + $0x50] sm:$0xff]
    %v49 = vld [vmem:[%s1 + $0x58] sm:$0xff]
    %v50 = vld [vmem:[%s1 + $0x60] sm:$0xff]
    %v51 = vld [vmem:[%s1 + $0x68] sm:$0xff]
    %v52 = vld [vmem:[%s1 + $0x70] sm:$0xff]
    %v53 = vld [vmem:[%s1 + $0x78] sm:$0xff]
    %v54 = vld [vmem:[%s1 + $0x80] sm:$0xff]
    %v55 = vld [vmem:[%s1 + $0x88] sm:$0xff]
    %v56 = vld [vmem:[%s1 + $0x90] sm:$0xff]
    %v57 = vld [vmem:[%s1 + $0x98] sm:$0xff]
    %v58 = vld [vmem:[%s1 + $0xa0] sm:$0xff]
    %v59 = vld [vmem:[%s1 + $0xa8] sm:$0xff]
    %v60 = vld [vmem:[%s1 + $0xb0] sm:$0xff]
    %v61 = vld [vmem:[%s1 + $0xb8] sm:$0xff]
    %v62 = vld [vmem:[%s1 + $0xc0] sm:$0xff]
    %v63 = vld [vmem:[%s1 + $0xc8] sm:$0xff]
    %v64 = vld [vmem:[%s1 + $0xd0] sm:$0xff]
    %v65 = vld [vmem:[%s1 + $0xd8] sm:$0xff]
    %v66 = vld [vmem:[%s1 + $0xe0] sm:$0xff]
    %v67 = vld [vmem:[%s1 + $0xe8] sm:$0xff]
    %v68 = vld [vmem:[%s1 + $0xf0] sm:$0xff]
    %v69 = vld [vmem:[%s1 + $0xf8] sm:$0xff]
    %71 = vset.pattern.permute.xlu0 0
    %72 = vperm.xlu0 %71, %v38
    %v73 = vpop.permute.xlu0 %72
    %76 = vset.pattern.permute.xlu0 0
    %77 = vperm.xlu0 %76, %v39
    %v78 = vpop.permute.xlu0 %77
    %81 = vset.pattern.permute.xlu0 0
    %82 = vperm.xlu0 %81, %v40
    %v83 = vpop.permute.xlu0 %82
    %86 = vset.pattern.permute.xlu0 0
    %87 = vperm.xlu0 %86, %v41
    %v88 = vpop.permute.xlu0 %87
    %91 = vset.pattern.permute.xlu0 0
    %92 = vperm.xlu0 %91, %v42
    %v93 = vpop.permute.xlu0 %92
    %96 = vset.pattern.permute.xlu0 0
    %97 = vperm.xlu0 %96, %v43
    %v98 = vpop.permute.xlu0 %97
    %101 = vset.pattern.permute.xlu0 0
    %102 = vperm.xlu0 %101, %v44
    %v103 = vpop.permute.xlu0 %102
    %106 = vset.pattern.permute.xlu0 0
    %107 = vperm.xlu0 %106, %v45
    %v108 = vpop.permute.xlu0 %107
    %111 = vset.pattern.permute.xlu0 0
    %112 = vperm.xlu0 %111, %v46
    %v113 = vpop.permute.xlu0 %112
    %116 = vset.pattern.permute.xlu0 0
    %117 = vperm.xlu0 %116, %v47
    %v118 = vpop.permute.xlu0 %117
    %121 = vset.pattern.permute.xlu0 0
    %122 = vperm.xlu0 %121, %v48
    %v123 = vpop.permute.xlu0 %122
    %126 = vset.pattern.permute.xlu0 0
    %127 = vperm.xlu0 %126, %v49
    %v128 = vpop.permute.xlu0 %127
    %131 = vset.pattern.permute.xlu0 0
    %132 = vperm.xlu0 %131, %v50
    %v133 = vpop.permute.xlu0 %132
    %136 = vset.pattern.permute.xlu0 0
    %137 = vperm.xlu0 %136, %v51
    %v138 = vpop.permute.xlu0 %137
    %141 = vset.pattern.permute.xlu0 0
    %142 = vperm.xlu0 %141, %v52
    %v143 = vpop.permute.xlu0 %142
    %146 = vset.pattern.permute.xlu0 0
    %147 = vperm.xlu0 %146, %v53
    %v148 = vpop.permute.xlu0 %147
    %151 = vset.pattern.permute.xlu0 0
    %152 = vperm.xlu0 %151, %v54
    %v153 = vpop.permute.xlu0 %152
    %156 = vset.pattern.permute.xlu0 0
    %157 = vperm.xlu0 %156, %v55
    %v158 = vpop.permute.xlu0 %157
    %161 = vset.pattern.permute.xlu0 0
    %162 = vperm.xlu0 %161, %v56
    %v163 = vpop.permute.xlu0 %162
    %166 = vset.pattern.permute.xlu0 0
    %167 = vperm.xlu0 %166, %v57
    %v168 = vpop.permute.xlu0 %167
    %171 = vset.pattern.permute.xlu0 0
    %172 = vperm.xlu0 %171, %v58
    %v173 = vpop.permute.xlu0 %172
    %176 = vset.pattern.permute.xlu0 0
    %177 = vperm.xlu0 %176, %v59
    %v178 = vpop.permute.xlu0 %177
    %181 = vset.pattern.permute.xlu0 0
    %182 = vperm.xlu0 %181, %v60
    %v183 = vpop.permute.xlu0 %182
    %186 = vset.pattern.permute.xlu0 0
    %187 = vperm.xlu0 %186, %v61
    %v188 = vpop.permute.xlu0 %187
    %191 = vset.pattern.permute.xlu0 0
    %192 = vperm.xlu0 %191, %v62
    %v193 = vpop.permute.xlu0 %192
    %196 = vset.pattern.permute.xlu0 0
    %197 = vperm.xlu0 %196, %v63
    %v198 = vpop.permute.xlu0 %197
    %201 = vset.pattern.permute.xlu0 0
    %202 = vperm.xlu0 %201, %v64
    %v203 = vpop.permute.xlu0 %202
    %206 = vset.pattern.permute.xlu0 0
    %207 = vperm.xlu0 %206, %v65
    %v208 = vpop.permute.xlu0 %207
    %211 = vset.pattern.permute.xlu0 0
    %212 = vperm.xlu0 %211, %v66
    %v213 = vpop.permute.xlu0 %212
    %216 = vset.pattern.permute.xlu0 0
    %217 = vperm.xlu0 %216, %v67
    %v218 = vpop.permute.xlu0 %217
    %221 = vset.pattern.permute.xlu0 0
    %222 = vperm.xlu0 %221, %v68
    %v223 = vpop.permute.xlu0 %222
    %226 = vset.pattern.permute.xlu0 0
    %227 = vperm.xlu0 %226, %v69
    %v228 = vpop.permute.xlu0 %227
    %v231 = vlaneseq
    %v232 = vshrl.u32 %v231, 7
    %v233 = vsub.s32 0, %v232
    %v234 = vrot.slane %v35, %v233
    %v235 = vlaneseq
    %v236 = vshrl.u32 %v235, 7
    %v237 = vsub.s32 1, %v236
    %v238 = vrot.slane %v35, %v237
    %v241 = vmul.f32 %v73, %v234
    %v242 = vmul.f32 %v73, %v238
    %v243 = vmul.f32 %v78, %v234
    %v244 = vmul.f32 %v78, %v238
    %v245 = vmul.f32 %v83, %v234
    %v246 = vmul.f32 %v83, %v238
    %v247 = vmul.f32 %v88, %v234
    %v248 = vmul.f32 %v88, %v238
    %v249 = vmul.f32 %v93, %v234
    %v250 = vmul.f32 %v93, %v238
    %v251 = vmul.f32 %v98, %v234
    %v252 = vmul.f32 %v98, %v238
    %v253 = vmul.f32 %v103, %v234
    %v254 = vmul.f32 %v103, %v238
    %v255 = vmul.f32 %v108, %v234
    %v256 = vmul.f32 %v108, %v238
    %v257 = vmul.f32 %v113, %v234
    %v258 = vmul.f32 %v113, %v238
    %v259 = vmul.f32 %v118, %v234
    %v260 = vmul.f32 %v118, %v238
    %v261 = vmul.f32 %v123, %v234
    %v262 = vmul.f32 %v123, %v238
    %v263 = vmul.f32 %v128, %v234
    %v264 = vmul.f32 %v128, %v238
    %v265 = vmul.f32 %v133, %v234
    %v266 = vmul.f32 %v133, %v238
    %v267 = vmul.f32 %v138, %v234
    %v268 = vmul.f32 %v138, %v238
    %v269 = vmul.f32 %v143, %v234
    %v270 = vmul.f32 %v143, %v238
    %v271 = vmul.f32 %v148, %v234
    %v272 = vmul.f32 %v148, %v238
    %v273 = vmul.f32 %v153, %v234
    %v274 = vmul.f32 %v153, %v238
    %v275 = vmul.f32 %v158, %v234
    %v276 = vmul.f32 %v158, %v238
    %v277 = vmul.f32 %v163, %v234
    %v278 = vmul.f32 %v163, %v238
    %v279 = vmul.f32 %v168, %v234
    %v280 = vmul.f32 %v168, %v238
    %v281 = vmul.f32 %v173, %v234
    %v282 = vmul.f32 %v173, %v238
    %v283 = vmul.f32 %v178, %v234
    %v284 = vmul.f32 %v178, %v238
    %v285 = vmul.f32 %v183, %v234
    %v286 = vmul.f32 %v183, %v238
    %v287 = vmul.f32 %v188, %v234
    %v288 = vmul.f32 %v188, %v238
    %v289 = vmul.f32 %v193, %v234
    %v290 = vmul.f32 %v193, %v238
    %v291 = vmul.f32 %v198, %v234
    %v292 = vmul.f32 %v198, %v238
    %v293 = vmul.f32 %v203, %v234
    %v294 = vmul.f32 %v203, %v238
    %v295 = vmul.f32 %v208, %v234
    %v296 = vmul.f32 %v208, %v238
    %v297 = vmul.f32 %v213, %v234
    %v298 = vmul.f32 %v213, %v238
    %v299 = vmul.f32 %v218, %v234
    %v300 = vmul.f32 %v218, %v238
    %v301 = vmul.f32 %v223, %v234
    %v302 = vmul.f32 %v223, %v238
    %v303 = vmul.f32 %v228, %v234
    %v304 = vmul.f32 %v228, %v238
    %305 = vset.pattern.permute.xlu0 1
    %306 = vperm.xlu0 %305, %v38
    %v307 = vpop.permute.xlu0 %306
    %309 = vset.pattern.permute.xlu0 1
    %310 = vperm.xlu0 %309, %v39
    %v311 = vpop.permute.xlu0 %310
    %313 = vset.pattern.permute.xlu0 1
    %314 = vperm.xlu0 %313, %v40
    %v315 = vpop.permute.xlu0 %314
    %317 = vset.pattern.permute.xlu0 1
    %318 = vperm.xlu0 %317, %v41
    %v319 = vpop.permute.xlu0 %318
    %321 = vset.pattern.permute.xlu0 1
    %322 = vperm.xlu0 %321, %v42
    %v323 = vpop.permute.xlu0 %322
    %325 = vset.pattern.permute.xlu0 1
    %326 = vperm.xlu0 %325, %v43
    %v327 = vpop.permute.xlu0 %326
    %329 = vset.pattern.permute.xlu0 1
    %330 = vperm.xlu0 %329, %v44
    %v331 = vpop.permute.xlu0 %330
    %333 = vset.pattern.permute.xlu0 1
    %334 = vperm.xlu0 %333, %v45
    %v335 = vpop.permute.xlu0 %334
    %337 = vset.pattern.permute.xlu0 1
    %338 = vperm.xlu0 %337, %v46
    %v339 = vpop.permute.xlu0 %338
    %341 = vset.pattern.permute.xlu0 1
    %342 = vperm.xlu0 %341, %v47
    %v343 = vpop.permute.xlu0 %342
    %345 = vset.pattern.permute.xlu0 1
    %346 = vperm.xlu0 %345, %v48
    %v347 = vpop.permute.xlu0 %346
    %349 = vset.pattern.permute.xlu0 1
    %350 = vperm.xlu0 %349, %v49
    %v351 = vpop.permute.xlu0 %350
    %353 = vset.pattern.permute.xlu0 1
    %354 = vperm.xlu0 %353, %v50
    %v355 = vpop.permute.xlu0 %354
    %357 = vset.pattern.permute.xlu0 1
    %358 = vperm.xlu0 %357, %v51
    %v359 = vpop.permute.xlu0 %358
    %361 = vset.pattern.permute.xlu0 1
    %362 = vperm.xlu0 %361, %v52
    %v363 = vpop.permute.xlu0 %362
    %365 = vset.pattern.permute.xlu0 1
    %366 = vperm.xlu0 %365, %v53
    %v367 = vpop.permute.xlu0 %366
    %369 = vset.pattern.permute.xlu0 1
    %370 = vperm.xlu0 %369, %v54
    %v371 = vpop.permute.xlu0 %370
    %373 = vset.pattern.permute.xlu0 1
    %374 = vperm.xlu0 %373, %v55
    %v375 = vpop.permute.xlu0 %374
    %377 = vset.pattern.permute.xlu0 1
    %378 = vperm.xlu0 %377, %v56
    %v379 = vpop.permute.xlu0 %378
    %381 = vset.pattern.permute.xlu0 1
    %382 = vperm.xlu0 %381, %v57
    %v383 = vpop.permute.xlu0 %382
    %385 = vset.pattern.permute.xlu0 1
    %386 = vperm.xlu0 %385, %v58
    %v387 = vpop.permute.xlu0 %386
    %389 = vset.pattern.permute.xlu0 1
    %390 = vperm.xlu0 %389, %v59
    %v391 = vpop.permute.xlu0 %390
    %393 = vset.pattern.permute.xlu0 1
    %394 = vperm.xlu0 %393, %v60
    %v395 = vpop.permute.xlu0 %394
    %397 = vset.pattern.permute.xlu0 1
    %398 = vperm.xlu0 %397, %v61
    %v399 = vpop.permute.xlu0 %398
    %401 = vset.pattern.permute.xlu0 1
    %402 = vperm.xlu0 %401, %v62
    %v403 = vpop.permute.xlu0 %402
    %405 = vset.pattern.permute.xlu0 1
    %406 = vperm.xlu0 %405, %v63
    %v407 = vpop.permute.xlu0 %406
    %409 = vset.pattern.permute.xlu0 1
    %410 = vperm.xlu0 %409, %v64
    %v411 = vpop.permute.xlu0 %410
    %413 = vset.pattern.permute.xlu0 1
    %414 = vperm.xlu0 %413, %v65
    %v415 = vpop.permute.xlu0 %414
    %417 = vset.pattern.permute.xlu0 1
    %418 = vperm.xlu0 %417, %v66
    %v419 = vpop.permute.xlu0 %418
    %421 = vset.pattern.permute.xlu0 1
    %422 = vperm.xlu0 %421, %v67
    %v423 = vpop.permute.xlu0 %422
    %425 = vset.pattern.permute.xlu0 1
    %426 = vperm.xlu0 %425, %v68
    %v427 = vpop.permute.xlu0 %426
    %429 = vset.pattern.permute.xlu0 1
    %430 = vperm.xlu0 %429, %v69
    %v431 = vpop.permute.xlu0 %430
    %v434 = vlaneseq
    %v435 = vshrl.u32 %v434, 7
    %v436 = vsub.s32 0, %v435
    %v437 = vrot.slane %v37, %v436
    %v438 = vlaneseq
    %v439 = vshrl.u32 %v438, 7
    %v440 = vsub.s32 1, %v439
    %v441 = vrot.slane %v37, %v440
    %v444 = vmul.f32 %v307, %v437
    %v445 = vmul.f32 %v307, %v441
    %v446 = vmul.f32 %v311, %v437
    %v447 = vmul.f32 %v311, %v441
    %v448 = vmul.f32 %v315, %v437
    %v449 = vmul.f32 %v315, %v441
    %v450 = vmul.f32 %v319, %v437
    %v451 = vmul.f32 %v319, %v441
    %v452 = vmul.f32 %v323, %v437
    %v453 = vmul.f32 %v323, %v441
    %v454 = vmul.f32 %v327, %v437
    %v455 = vmul.f32 %v327, %v441
    %v456 = vmul.f32 %v331, %v437
    %v457 = vmul.f32 %v331, %v441
    %v458 = vmul.f32 %v335, %v437
    %v459 = vmul.f32 %v335, %v441
    %v460 = vmul.f32 %v339, %v437
    %v461 = vmul.f32 %v339, %v441
    %v462 = vmul.f32 %v343, %v437
    %v463 = vmul.f32 %v343, %v441
    %v464 = vmul.f32 %v347, %v437
    %v465 = vmul.f32 %v347, %v441
    %v466 = vmul.f32 %v351, %v437
    %v467 = vmul.f32 %v351, %v441
    %v468 = vmul.f32 %v355, %v437
    %v469 = vmul.f32 %v355, %v441
    %v470 = vmul.f32 %v359, %v437
    %v471 = vmul.f32 %v359, %v441
    %v472 = vmul.f32 %v363, %v437
    %v473 = vmul.f32 %v363, %v441
    %v474 = vmul.f32 %v367, %v437
    %v475 = vmul.f32 %v367, %v441
    %v476 = vmul.f32 %v371, %v437
    %v477 = vmul.f32 %v371, %v441
    %v478 = vmul.f32 %v375, %v437
    %v479 = vmul.f32 %v375, %v441
    %v480 = vmul.f32 %v379, %v437
    %v481 = vmul.f32 %v379, %v441
    %v482 = vmul.f32 %v383, %v437
    %v483 = vmul.f32 %v383, %v441
    %v484 = vmul.f32 %v387, %v437
    %v485 = vmul.f32 %v387, %v441
    %v486 = vmul.f32 %v391, %v437
    %v487 = vmul.f32 %v391, %v441
    %v488 = vmul.f32 %v395, %v437
    %v489 = vmul.f32 %v395, %v441
    %v490 = vmul.f32 %v399, %v437
    %v491 = vmul.f32 %v399, %v441
    %v492 = vmul.f32 %v403, %v437
    %v493 = vmul.f32 %v403, %v441
    %v494 = vmul.f32 %v407, %v437
    %v495 = vmul.f32 %v407, %v441
    %v496 = vmul.f32 %v411, %v437
    %v497 = vmul.f32 %v411, %v441
    %v498 = vmul.f32 %v415, %v437
    %v499 = vmul.f32 %v415, %v441
    %v500 = vmul.f32 %v419, %v437
    %v501 = vmul.f32 %v419, %v441
    %v502 = vmul.f32 %v423, %v437
    %v503 = vmul.f32 %v423, %v441
    %v504 = vmul.f32 %v427, %v437
    %v505 = vmul.f32 %v427, %v441
    %v506 = vmul.f32 %v431, %v437
    %v507 = vmul.f32 %v431, %v441
    %v508 = vadd.f32 %v241, %v444
    %v509 = vadd.f32 %v242, %v445
    %v510 = vadd.f32 %v243, %v446
    %v511 = vadd.f32 %v244, %v447
    %v512 = vadd.f32 %v245, %v448
    %v513 = vadd.f32 %v246, %v449
    %v514 = vadd.f32 %v247, %v450
    %v515 = vadd.f32 %v248, %v451
    %v516 = vadd.f32 %v249, %v452
    %v517 = vadd.f32 %v250, %v453
    %v518 = vadd.f32 %v251, %v454
    %v519 = vadd.f32 %v252, %v455
    %v520 = vadd.f32 %v253, %v456
    %v521 = vadd.f32 %v254, %v457
    %v522 = vadd.f32 %v255, %v458
    %v523 = vadd.f32 %v256, %v459
    %v524 = vadd.f32 %v257, %v460
    %v525 = vadd.f32 %v258, %v461
    %v526 = vadd.f32 %v259, %v462
    %v527 = vadd.f32 %v260, %v463
    %v528 = vadd.f32 %v261, %v464
    %v529 = vadd.f32 %v262, %v465
    %v530 = vadd.f32 %v263, %v466
    %v531 = vadd.f32 %v264, %v467
    %v532 = vadd.f32 %v265, %v468
    %v533 = vadd.f32 %v266, %v469
    %v534 = vadd.f32 %v267, %v470
    %v535 = vadd.f32 %v268, %v471
    %v536 = vadd.f32 %v269, %v472
    %v537 = vadd.f32 %v270, %v473
    %v538 = vadd.f32 %v271, %v474
    %v539 = vadd.f32 %v272, %v475
    %v540 = vadd.f32 %v273, %v476
    %v541 = vadd.f32 %v274, %v477
    %v542 = vadd.f32 %v275, %v478
    %v543 = vadd.f32 %v276, %v479
    %v544 = vadd.f32 %v277, %v480
    %v545 = vadd.f32 %v278, %v481
    %v546 = vadd.f32 %v279, %v482
    %v547 = vadd.f32 %v280, %v483
    %v548 = vadd.f32 %v281, %v484
    %v549 = vadd.f32 %v282, %v485
    %v550 = vadd.f32 %v283, %v486
    %v551 = vadd.f32 %v284, %v487
    %v552 = vadd.f32 %v285, %v488
    %v553 = vadd.f32 %v286, %v489
    %v554 = vadd.f32 %v287, %v490
    %v555 = vadd.f32 %v288, %v491
    %v556 = vadd.f32 %v289, %v492
    %v557 = vadd.f32 %v290, %v493
    %v558 = vadd.f32 %v291, %v494
    %v559 = vadd.f32 %v292, %v495
    %v560 = vadd.f32 %v293, %v496
    %v561 = vadd.f32 %v294, %v497
    %v562 = vadd.f32 %v295, %v498
    %v563 = vadd.f32 %v296, %v499
    %v564 = vadd.f32 %v297, %v500
    %v565 = vadd.f32 %v298, %v501
    %v566 = vadd.f32 %v299, %v502
    %v567 = vadd.f32 %v300, %v503
    %v568 = vadd.f32 %v301, %v504
    %v569 = vadd.f32 %v302, %v505
    %v570 = vadd.f32 %v303, %v506
    %v571 = vadd.f32 %v304, %v507
    %v572 = vld [vmem:[%s2] sm:$0xff]
    %v573 = vld [vmem:[%s2 + $0x8] sm:$0xff]
    %v574 = vld [vmem:[%s2 + $0x10] sm:$0xff]
    %v575 = vld [vmem:[%s2 + $0x18] sm:$0xff]
    %v576 = vld [vmem:[%s2 + $0x20] sm:$0xff]
    %v577 = vld [vmem:[%s2 + $0x28] sm:$0xff]
    %v578 = vld [vmem:[%s2 + $0x30] sm:$0xff]
    %v579 = vld [vmem:[%s2 + $0x38] sm:$0xff]
    %v580 = vld [vmem:[%s2 + $0x40] sm:$0xff]
    %v581 = vld [vmem:[%s2 + $0x48] sm:$0xff]
    %v582 = vld [vmem:[%s2 + $0x50] sm:$0xff]
    %v583 = vld [vmem:[%s2 + $0x58] sm:$0xff]
    %v584 = vld [vmem:[%s2 + $0x60] sm:$0xff]
    %v585 = vld [vmem:[%s2 + $0x68] sm:$0xff]
    %v586 = vld [vmem:[%s2 + $0x70] sm:$0xff]
    %v587 = vld [vmem:[%s2 + $0x78] sm:$0xff]
    %v588 = vld [vmem:[%s2 + $0x80] sm:$0xff]
    %v589 = vld [vmem:[%s2 + $0x88] sm:$0xff]
    %v590 = vld [vmem:[%s2 + $0x90] sm:$0xff]
    %v591 = vld [vmem:[%s2 + $0x98] sm:$0xff]
    %v592 = vld [vmem:[%s2 + $0xa0] sm:$0xff]
    %v593 = vld [vmem:[%s2 + $0xa8] sm:$0xff]
    %v594 = vld [vmem:[%s2 + $0xb0] sm:$0xff]
    %v595 = vld [vmem:[%s2 + $0xb8] sm:$0xff]
    %v596 = vld [vmem:[%s2 + $0xc0] sm:$0xff]
    %v597 = vld [vmem:[%s2 + $0xc8] sm:$0xff]
    %v598 = vld [vmem:[%s2 + $0xd0] sm:$0xff]
    %v599 = vld [vmem:[%s2 + $0xd8] sm:$0xff]
    %v600 = vld [vmem:[%s2 + $0xe0] sm:$0xff]
    %v601 = vld [vmem:[%s2 + $0xe8] sm:$0xff]
    %v602 = vld [vmem:[%s2 + $0xf0] sm:$0xff]
    %v603 = vld [vmem:[%s2 + $0xf8] sm:$0xff]
    %605 = vset.pattern.permute.xlu0 0
    %606 = vperm.xlu0 %605, %v572
    %v607 = vpop.permute.xlu0 %606
    %610 = vset.pattern.permute.xlu0 0
    %611 = vperm.xlu0 %610, %v573
    %v612 = vpop.permute.xlu0 %611
    %615 = vset.pattern.permute.xlu0 0
    %616 = vperm.xlu0 %615, %v574
    %v617 = vpop.permute.xlu0 %616
    %620 = vset.pattern.permute.xlu0 0
    %621 = vperm.xlu0 %620, %v575
    %v622 = vpop.permute.xlu0 %621
    %625 = vset.pattern.permute.xlu0 0
    %626 = vperm.xlu0 %625, %v576
    %v627 = vpop.permute.xlu0 %626
    %630 = vset.pattern.permute.xlu0 0
    %631 = vperm.xlu0 %630, %v577
    %v632 = vpop.permute.xlu0 %631
    %635 = vset.pattern.permute.xlu0 0
    %636 = vperm.xlu0 %635, %v578
    %v637 = vpop.permute.xlu0 %636
    %640 = vset.pattern.permute.xlu0 0
    %641 = vperm.xlu0 %640, %v579
    %v642 = vpop.permute.xlu0 %641
    %645 = vset.pattern.permute.xlu0 0
    %646 = vperm.xlu0 %645, %v580
    %v647 = vpop.permute.xlu0 %646
    %650 = vset.pattern.permute.xlu0 0
    %651 = vperm.xlu0 %650, %v581
    %v652 = vpop.permute.xlu0 %651
    %655 = vset.pattern.permute.xlu0 0
    %656 = vperm.xlu0 %655, %v582
    %v657 = vpop.permute.xlu0 %656
    %660 = vset.pattern.permute.xlu0 0
    %661 = vperm.xlu0 %660, %v583
    %v662 = vpop.permute.xlu0 %661
    %665 = vset.pattern.permute.xlu0 0
    %666 = vperm.xlu0 %665, %v584
    %v667 = vpop.permute.xlu0 %666
    %670 = vset.pattern.permute.xlu0 0
    %671 = vperm.xlu0 %670, %v585
    %v672 = vpop.permute.xlu0 %671
    %675 = vset.pattern.permute.xlu0 0
    %676 = vperm.xlu0 %675, %v586
    %v677 = vpop.permute.xlu0 %676
    %680 = vset.pattern.permute.xlu0 0
    %681 = vperm.xlu0 %680, %v587
    %v682 = vpop.permute.xlu0 %681
    %685 = vset.pattern.permute.xlu0 0
    %686 = vperm.xlu0 %685, %v588
    %v687 = vpop.permute.xlu0 %686
    %690 = vset.pattern.permute.xlu0 0
    %691 = vperm.xlu0 %690, %v589
    %v692 = vpop.permute.xlu0 %691
    %695 = vset.pattern.permute.xlu0 0
    %696 = vperm.xlu0 %695, %v590
    %v697 = vpop.permute.xlu0 %696
    %700 = vset.pattern.permute.xlu0 0
    %701 = vperm.xlu0 %700, %v591
    %v702 = vpop.permute.xlu0 %701
    %705 = vset.pattern.permute.xlu0 0
    %706 = vperm.xlu0 %705, %v592
    %v707 = vpop.permute.xlu0 %706
    %710 = vset.pattern.permute.xlu0 0
    %711 = vperm.xlu0 %710, %v593
    %v712 = vpop.permute.xlu0 %711
    %715 = vset.pattern.permute.xlu0 0
    %716 = vperm.xlu0 %715, %v594
    %v717 = vpop.permute.xlu0 %716
    %720 = vset.pattern.permute.xlu0 0
    %721 = vperm.xlu0 %720, %v595
    %v722 = vpop.permute.xlu0 %721
    %725 = vset.pattern.permute.xlu0 0
    %726 = vperm.xlu0 %725, %v596
    %v727 = vpop.permute.xlu0 %726
    %730 = vset.pattern.permute.xlu0 0
    %731 = vperm.xlu0 %730, %v597
    %v732 = vpop.permute.xlu0 %731
    %735 = vset.pattern.permute.xlu0 0
    %736 = vperm.xlu0 %735, %v598
    %v737 = vpop.permute.xlu0 %736
    %740 = vset.pattern.permute.xlu0 0
    %741 = vperm.xlu0 %740, %v599
    %v742 = vpop.permute.xlu0 %741
    %745 = vset.pattern.permute.xlu0 0
    %746 = vperm.xlu0 %745, %v600
    %v747 = vpop.permute.xlu0 %746
    %750 = vset.pattern.permute.xlu0 0
    %751 = vperm.xlu0 %750, %v601
    %v752 = vpop.permute.xlu0 %751
    %755 = vset.pattern.permute.xlu0 0
    %756 = vperm.xlu0 %755, %v602
    %v757 = vpop.permute.xlu0 %756
    %760 = vset.pattern.permute.xlu0 0
    %761 = vperm.xlu0 %760, %v603
    %v762 = vpop.permute.xlu0 %761
    %v764 = vadd.f32 %v508, %v607
    %v765 = vadd.f32 %v509, %v607
    %v766 = vadd.f32 %v510, %v612
    %v767 = vadd.f32 %v511, %v612
    %v768 = vadd.f32 %v512, %v617
    %v769 = vadd.f32 %v513, %v617
    %v770 = vadd.f32 %v514, %v622
    %v771 = vadd.f32 %v515, %v622
    %v772 = vadd.f32 %v516, %v627
    %v773 = vadd.f32 %v517, %v627
    %v774 = vadd.f32 %v518, %v632
    %v775 = vadd.f32 %v519, %v632
    %v776 = vadd.f32 %v520, %v637
    %v777 = vadd.f32 %v521, %v637
    %v778 = vadd.f32 %v522, %v642
    %v779 = vadd.f32 %v523, %v642
    %v780 = vadd.f32 %v524, %v647
    %v781 = vadd.f32 %v525, %v647
    %v782 = vadd.f32 %v526, %v652
    %v783 = vadd.f32 %v527, %v652
    %v784 = vadd.f32 %v528, %v657
    %v785 = vadd.f32 %v529, %v657
    %v786 = vadd.f32 %v530, %v662
    %v787 = vadd.f32 %v531, %v662
    %v788 = vadd.f32 %v532, %v667
    %v789 = vadd.f32 %v533, %v667
    %v790 = vadd.f32 %v534, %v672
    %v791 = vadd.f32 %v535, %v672
    %v792 = vadd.f32 %v536, %v677
    %v793 = vadd.f32 %v537, %v677
    %v794 = vadd.f32 %v538, %v682
    %v795 = vadd.f32 %v539, %v682
    %v796 = vadd.f32 %v540, %v687
    %v797 = vadd.f32 %v541, %v687
    %v798 = vadd.f32 %v542, %v692
    %v799 = vadd.f32 %v543, %v692
    %v800 = vadd.f32 %v544, %v697
    %v801 = vadd.f32 %v545, %v697
    %v802 = vadd.f32 %v546, %v702
    %v803 = vadd.f32 %v547, %v702
    %v804 = vadd.f32 %v548, %v707
    %v805 = vadd.f32 %v549, %v707
    %v806 = vadd.f32 %v550, %v712
    %v807 = vadd.f32 %v551, %v712
    %v808 = vadd.f32 %v552, %v717
    %v809 = vadd.f32 %v553, %v717
    %v810 = vadd.f32 %v554, %v722
    %v811 = vadd.f32 %v555, %v722
    %v812 = vadd.f32 %v556, %v727
    %v813 = vadd.f32 %v557, %v727
    %v814 = vadd.f32 %v558, %v732
    %v815 = vadd.f32 %v559, %v732
    %v816 = vadd.f32 %v560, %v737
    %v817 = vadd.f32 %v561, %v737
    %v818 = vadd.f32 %v562, %v742
    %v819 = vadd.f32 %v563, %v742
    %v820 = vadd.f32 %v564, %v747
    %v821 = vadd.f32 %v565, %v747
    %v822 = vadd.f32 %v566, %v752
    %v823 = vadd.f32 %v567, %v752
    %v824 = vadd.f32 %v568, %v757
    %v825 = vadd.f32 %v569, %v757
    %v826 = vadd.f32 %v570, %v762
    %v827 = vadd.f32 %v571, %v762
    %v828 = vmax.f32 %v764, 0.0
    %v829 = vmax.f32 %v765, 0.0
    %v830 = vmax.f32 %v766, 0.0
    %v831 = vmax.f32 %v767, 0.0
    %v832 = vmax.f32 %v768, 0.0
    %v833 = vmax.f32 %v769, 0.0
    %v834 = vmax.f32 %v770, 0.0
    %v835 = vmax.f32 %v771, 0.0
    %v836 = vmax.f32 %v772, 0.0
    %v837 = vmax.f32 %v773, 0.0
    %v838 = vmax.f32 %v774, 0.0
    %v839 = vmax.f32 %v775, 0.0
    %v840 = vmax.f32 %v776, 0.0
    %v841 = vmax.f32 %v777, 0.0
    %v842 = vmax.f32 %v778, 0.0
    %v843 = vmax.f32 %v779, 0.0
    %v844 = vmax.f32 %v780, 0.0
    %v845 = vmax.f32 %v781, 0.0
    %v846 = vmax.f32 %v782, 0.0
    %v847 = vmax.f32 %v783, 0.0
    %v848 = vmax.f32 %v784, 0.0
    %v849 = vmax.f32 %v785, 0.0
    %v850 = vmax.f32 %v786, 0.0
    %v851 = vmax.f32 %v787, 0.0
    %v852 = vmax.f32 %v788, 0.0
    %v853 = vmax.f32 %v789, 0.0
    %v854 = vmax.f32 %v790, 0.0
    %v855 = vmax.f32 %v791, 0.0
    %v856 = vmax.f32 %v792, 0.0
    %v857 = vmax.f32 %v793, 0.0
    %v858 = vmax.f32 %v794, 0.0
    %v859 = vmax.f32 %v795, 0.0
    %v860 = vmax.f32 %v796, 0.0
    %v861 = vmax.f32 %v797, 0.0
    %v862 = vmax.f32 %v798, 0.0
    %v863 = vmax.f32 %v799, 0.0
    %v864 = vmax.f32 %v800, 0.0
    %v865 = vmax.f32 %v801, 0.0
    %v866 = vmax.f32 %v802, 0.0
    %v867 = vmax.f32 %v803, 0.0
    %v868 = vmax.f32 %v804, 0.0
    %v869 = vmax.f32 %v805, 0.0
    %v870 = vmax.f32 %v806, 0.0
    %v871 = vmax.f32 %v807, 0.0
    %v872 = vmax.f32 %v808, 0.0
    %v873 = vmax.f32 %v809, 0.0
    %v874 = vmax.f32 %v810, 0.0
    %v875 = vmax.f32 %v811, 0.0
    %v876 = vmax.f32 %v812, 0.0
    %v877 = vmax.f32 %v813, 0.0
    %v878 = vmax.f32 %v814, 0.0
    %v879 = vmax.f32 %v815, 0.0
    %v880 = vmax.f32 %v816, 0.0
    %v881 = vmax.f32 %v817, 0.0
    %v882 = vmax.f32 %v818, 0.0
    %v883 = vmax.f32 %v819, 0.0
    %v884 = vmax.f32 %v820, 0.0
    %v885 = vmax.f32 %v821, 0.0
    %v886 = vmax.f32 %v822, 0.0
    %v887 = vmax.f32 %v823, 0.0
    %v888 = vmax.f32 %v824, 0.0
    %v889 = vmax.f32 %v825, 0.0
    %v890 = vmax.f32 %v826, 0.0
    %v891 = vmax.f32 %v827, 0.0
    %v892 = vld [vmem:[%s3] sm:$0xff]
    %v893 = vld [vmem:[%s3 + $0x8] sm:$0xff]
    %v894 = vld [vmem:[%s3 + $0x10] sm:$0xff]
    %v895 = vld [vmem:[%s3 + $0x18] sm:$0xff]
    %v896 = vld [vmem:[%s3 + $0x20] sm:$0xff]
    %v897 = vld [vmem:[%s3 + $0x28] sm:$0xff]
    %v898 = vld [vmem:[%s3 + $0x30] sm:$0xff]
    %v899 = vld [vmem:[%s3 + $0x38] sm:$0xff]
    %v900 = vld [vmem:[%s3 + $0x40] sm:$0xff]
    %v901 = vld [vmem:[%s3 + $0x48] sm:$0xff]
    %v902 = vld [vmem:[%s3 + $0x50] sm:$0xff]
    %v903 = vld [vmem:[%s3 + $0x58] sm:$0xff]
    %v904 = vld [vmem:[%s3 + $0x60] sm:$0xff]
    %v905 = vld [vmem:[%s3 + $0x68] sm:$0xff]
    %v906 = vld [vmem:[%s3 + $0x70] sm:$0xff]
    %v907 = vld [vmem:[%s3 + $0x78] sm:$0xff]
    %v908 = vld [vmem:[%s3 + $0x80] sm:$0xff]
    %v909 = vld [vmem:[%s3 + $0x88] sm:$0xff]
    %v910 = vld [vmem:[%s3 + $0x90] sm:$0xff]
    %v911 = vld [vmem:[%s3 + $0x98] sm:$0xff]
    %v912 = vld [vmem:[%s3 + $0xa0] sm:$0xff]
    %v913 = vld [vmem:[%s3 + $0xa8] sm:$0xff]
    %v914 = vld [vmem:[%s3 + $0xb0] sm:$0xff]
    %v915 = vld [vmem:[%s3 + $0xb8] sm:$0xff]
    %v916 = vld [vmem:[%s3 + $0xc0] sm:$0xff]
    %v917 = vld [vmem:[%s3 + $0xc8] sm:$0xff]
    %v918 = vld [vmem:[%s3 + $0xd0] sm:$0xff]
    %v919 = vld [vmem:[%s3 + $0xd8] sm:$0xff]
    %v920 = vld [vmem:[%s3 + $0xe0] sm:$0xff]
    %v921 = vld [vmem:[%s3 + $0xe8] sm:$0xff]
    %v922 = vld [vmem:[%s3 + $0xf0] sm:$0xff]
    %v923 = vld [vmem:[%s3 + $0xf8] sm:$0xff]
    %v924 = vld [vmem:[%s4] sm:$0xff]
    %v925 = vld [vmem:[%s4 + $0x8] sm:$0xff]
    %v926 = vld [vmem:[%s4 + $0x10] sm:$0xff]
    %v927 = vld [vmem:[%s4 + $0x18] sm:$0xff]
    %v928 = vld [vmem:[%s4 + $0x20] sm:$0xff]
    %v929 = vld [vmem:[%s4 + $0x28] sm:$0xff]
    %v930 = vld [vmem:[%s4 + $0x30] sm:$0xff]
    %v931 = vld [vmem:[%s4 + $0x38] sm:$0xff]
    %v932 = vld [vmem:[%s4 + $0x40] sm:$0xff]
    %v933 = vld [vmem:[%s4 + $0x48] sm:$0xff]
    %v934 = vld [vmem:[%s4 + $0x50] sm:$0xff]
    %v935 = vld [vmem:[%s4 + $0x58] sm:$0xff]
    %v936 = vld [vmem:[%s4 + $0x60] sm:$0xff]
    %v937 = vld [vmem:[%s4 + $0x68] sm:$0xff]
    %v938 = vld [vmem:[%s4 + $0x70] sm:$0xff]
    %v939 = vld [vmem:[%s4 + $0x78] sm:$0xff]
    %941 = vset.pattern.permute.xlu0 0
    %942 = vperm.xlu0 %941, %v924
    %v943 = vpop.permute.xlu0 %942
    %946 = vset.pattern.permute.xlu0 0
    %947 = vperm.xlu0 %946, %v925
    %v948 = vpop.permute.xlu0 %947
    %951 = vset.pattern.permute.xlu0 0
    %952 = vperm.xlu0 %951, %v926
    %v953 = vpop.permute.xlu0 %952
    %956 = vset.pattern.permute.xlu0 0
    %957 = vperm.xlu0 %956, %v927
    %v958 = vpop.permute.xlu0 %957
    %961 = vset.pattern.permute.xlu0 0
    %962 = vperm.xlu0 %961, %v928
    %v963 = vpop.permute.xlu0 %962
    %966 = vset.pattern.permute.xlu0 0
    %967 = vperm.xlu0 %966, %v929
    %v968 = vpop.permute.xlu0 %967
    %971 = vset.pattern.permute.xlu0 0
    %972 = vperm.xlu0 %971, %v930
    %v973 = vpop.permute.xlu0 %972
    %976 = vset.pattern.permute.xlu0 0
    %977 = vperm.xlu0 %976, %v931
    %v978 = vpop.permute.xlu0 %977
    %981 = vset.pattern.permute.xlu0 0
    %982 = vperm.xlu0 %981, %v932
    %v983 = vpop.permute.xlu0 %982
    %986 = vset.pattern.permute.xlu0 0
    %987 = vperm.xlu0 %986, %v933
    %v988 = vpop.permute.xlu0 %987
    %991 = vset.pattern.permute.xlu0 0
    %992 = vperm.xlu0 %991, %v934
    %v993 = vpop.permute.xlu0 %992
    %996 = vset.pattern.permute.xlu0 0
    %997 = vperm.xlu0 %996, %v935
    %v998 = vpop.permute.xlu0 %997
    %1001 = vset.pattern.permute.xlu0 0
    %1002 = vperm.xlu0 %1001, %v936
    %v1003 = vpop.permute.xlu0 %1002
    %1006 = vset.pattern.permute.xlu0 0
    %1007 = vperm.xlu0 %1006, %v937
    %v1008 = vpop.permute.xlu0 %1007
    %1011 = vset.pattern.permute.xlu0 0
    %1012 = vperm.xlu0 %1011, %v938
    %v1013 = vpop.permute.xlu0 %1012
    %1016 = vset.pattern.permute.xlu0 0
    %1017 = vperm.xlu0 %1016, %v939
    %v1018 = vpop.permute.xlu0 %1017
    %1020 = vmatprep.subr.mxu0 %v859
    %1021 = vmatpush1.msra.mxu0 %v858
    %1022 = vmatprep.subr.mxu0 %v857
    %1023 = vmatpush1.msra.mxu0 %v856
    %1024 = vmatprep.subr.mxu0 %v855
    %1025 = vmatpush1.msra.mxu0 %v854
    %1026 = vmatprep.subr.mxu0 %v853
    %1027 = vmatpush1.msra.mxu0 %v852
    %1028 = vmatprep.subr.mxu0 %v851
    %1029 = vmatpush1.msra.mxu0 %v850
    %1030 = vmatprep.subr.mxu0 %v849
    %1031 = vmatpush1.msra.mxu0 %v848
    %1032 = vmatprep.subr.mxu0 %v847
    %1033 = vmatpush1.msra.mxu0 %v846
    %1034 = vmatprep.subr.mxu0 %v845
    %1035 = vmatpush1.msra.mxu0 %v844
    %1036 = vmatprep.subr.mxu0 %v843
    %1037 = vmatpush1.msra.mxu0 %v842
    %1038 = vmatprep.subr.mxu0 %v841
    %1039 = vmatpush1.msra.mxu0 %v840
    %1040 = vmatprep.subr.mxu0 %v839
    %1041 = vmatpush1.msra.mxu0 %v838
    %1042 = vmatprep.subr.mxu0 %v837
    %1043 = vmatpush1.msra.mxu0 %v836
    %1044 = vmatprep.subr.mxu0 %v835
    %1045 = vmatpush1.msra.mxu0 %v834
    %1046 = vmatprep.subr.mxu0 %v833
    %1047 = vmatpush1.msra.mxu0 %v832
    %1048 = vmatprep.subr.mxu0 %v831
    %1049 = vmatpush1.msra.mxu0 %v830
    %1050 = vmatprep.subr.mxu0 %v829
    %1051 = vmatpush1.msra.mxu0 %v828
    %1052 = vmatprep.subr.mxu0 %v891
    %1053 = vmatpush2.msra.mxu0 %v890
    %1054 = vmatprep.subr.mxu0 %v889
    %1055 = vmatpush2.msra.mxu0 %v888
    %1056 = vmatprep.subr.mxu0 %v887
    %1057 = vmatpush2.msra.mxu0 %v886
    %1058 = vmatprep.subr.mxu0 %v885
    %1059 = vmatpush2.msra.mxu0 %v884
    %1060 = vmatprep.subr.mxu0 %v883
    %1061 = vmatpush2.msra.mxu0 %v882
    %1062 = vmatprep.subr.mxu0 %v881
    %1063 = vmatpush2.msra.mxu0 %v880
    %1064 = vmatprep.subr.mxu0 %v879
    %1065 = vmatpush2.msra.mxu0 %v878
    %1066 = vmatprep.subr.mxu0 %v877
    %1067 = vmatpush2.msra.mxu0 %v876
    %1068 = vmatprep.subr.mxu0 %v875
    %1069 = vmatpush2.msra.mxu0 %v874
    %1070 = vmatprep.subr.mxu0 %v873
    %1071 = vmatpush2.msra.mxu0 %v872
    %1072 = vmatprep.subr.mxu0 %v871
    %1073 = vmatpush2.msra.mxu0 %v870
    %1074 = vmatprep.subr.mxu0 %v869
    %1075 = vmatpush2.msra.mxu0 %v868
    %1076 = vmatprep.subr.mxu0 %v867
    %1077 = vmatpush2.msra.mxu0 %v866
    %1078 = vmatprep.subr.mxu0 %v865
    %1079 = vmatpush2.msra.mxu0 %v864
    %1080 = vmatprep.subr.mxu0 %v863
    %1081 = vmatpush2.msra.mxu0 %v862
    %1082 = vmatprep.subr.mxu0 %v861
    %1083 = vmatpush2.msra.mxu0 %v860
    %1084 = vmatprep.mubr.f32.mxu0 %v893
    %1085 = vmatmul.mubr.f32.gmra.mxu0 %v892
    %v1086 = vpop.f32.mrf.mxu0
    %v1087 = vadd.f32 %v943, %v1086
    %v1088 = vpop.f32.mrf.mxu0
    %v1089 = vadd.f32 %v943, %v1088
    %1090 = vmatprep.mubr.f32.mxu0 %v895
    %1091 = vmatmul.mubr.f32.gmra.mxu0 %v894
    %v1092 = vpop.f32.mrf.mxu0
    %v1093 = vadd.f32 %v948, %v1092
    %v1094 = vpop.f32.mrf.mxu0
    %v1095 = vadd.f32 %v948, %v1094
    %1096 = vmatprep.mubr.f32.mxu0 %v897
    %1097 = vmatmul.mubr.f32.gmra.mxu0 %v896
    %v1098 = vpop.f32.mrf.mxu0
    %v1099 = vadd.f32 %v953, %v1098
    %v1100 = vpop.f32.mrf.mxu0
    %v1101 = vadd.f32 %v953, %v1100
    %1102 = vmatprep.mubr.f32.mxu0 %v899
    %1103 = vmatmul.mubr.f32.gmra.mxu0 %v898
    %v1104 = vpop.f32.mrf.mxu0
    %v1105 = vadd.f32 %v958, %v1104
    %v1106 = vpop.f32.mrf.mxu0
    %v1107 = vadd.f32 %v958, %v1106
    %1108 = vmatprep.mubr.f32.mxu0 %v901
    %1109 = vmatmul.mubr.f32.gmra.mxu0 %v900
    %v1110 = vpop.f32.mrf.mxu0
    %v1111 = vadd.f32 %v963, %v1110
    %v1112 = vpop.f32.mrf.mxu0
    %v1113 = vadd.f32 %v963, %v1112
    %1114 = vmatprep.mubr.f32.mxu0 %v903
    %1115 = vmatmul.mubr.f32.gmra.mxu0 %v902
    %v1116 = vpop.f32.mrf.mxu0
    %v1117 = vadd.f32 %v968, %v1116
    %v1118 = vpop.f32.mrf.mxu0
    %v1119 = vadd.f32 %v968, %v1118
    %1120 = vmatprep.mubr.f32.mxu0 %v905
    %1121 = vmatmul.mubr.f32.gmra.mxu0 %v904
    %v1122 = vpop.f32.mrf.mxu0
    %v1123 = vadd.f32 %v973, %v1122
    %v1124 = vpop.f32.mrf.mxu0
    %v1125 = vadd.f32 %v973, %v1124
    %1126 = vmatprep.mubr.f32.mxu0 %v907
    %1127 = vmatmul.mubr.f32.gmra.mxu0 %v906
    %v1128 = vpop.f32.mrf.mxu0
    %v1129 = vadd.f32 %v978, %v1128
    %v1130 = vpop.f32.mrf.mxu0
    %v1131 = vadd.f32 %v978, %v1130
    %1132 = vmatprep.mubr.f32.mxu0 %v909
    %1133 = vmatmul.mubr.f32.gmra.mxu0 %v908
    %v1134 = vpop.f32.mrf.mxu0
    %v1135 = vadd.f32 %v983, %v1134
    %v1136 = vpop.f32.mrf.mxu0
    %v1137 = vadd.f32 %v983, %v1136
    %1138 = vmatprep.mubr.f32.mxu0 %v911
    %1139 = vmatmul.mubr.f32.gmra.mxu0 %v910
    %v1140 = vpop.f32.mrf.mxu0
    %v1141 = vadd.f32 %v988, %v1140
    %v1142 = vpop.f32.mrf.mxu0
    %v1143 = vadd.f32 %v988, %v1142
    %1144 = vmatprep.mubr.f32.mxu0 %v913
    %1145 = vmatmul.mubr.f32.gmra.mxu0 %v912
    %v1146 = vpop.f32.mrf.mxu0
    %v1147 = vadd.f32 %v993, %v1146
    %v1148 = vpop.f32.mrf.mxu0
    %v1149 = vadd.f32 %v993, %v1148
    %1150 = vmatprep.mubr.f32.mxu0 %v915
    %1151 = vmatmul.mubr.f32.gmra.mxu0 %v914
    %v1152 = vpop.f32.mrf.mxu0
    %v1153 = vadd.f32 %v998, %v1152
    %v1154 = vpop.f32.mrf.mxu0
    %v1155 = vadd.f32 %v998, %v1154
    %1156 = vmatprep.mubr.f32.mxu0 %v917
    %1157 = vmatmul.mubr.f32.gmra.mxu0 %v916
    %v1158 = vpop.f32.mrf.mxu0
    %v1159 = vadd.f32 %v1003, %v1158
    %v1160 = vpop.f32.mrf.mxu0
    %v1161 = vadd.f32 %v1003, %v1160
    %1162 = vmatprep.mubr.f32.mxu0 %v919
    %1163 = vmatmul.mubr.f32.gmra.mxu0 %v918
    %v1164 = vpop.f32.mrf.mxu0
    %v1165 = vadd.f32 %v1008, %v1164
    %v1166 = vpop.f32.mrf.mxu0
    %v1167 = vadd.f32 %v1008, %v1166
    %1168 = vmatprep.mubr.f32.mxu0 %v921
    %1169 = vmatmul.mubr.f32.gmra.mxu0 %v920
    %v1170 = vpop.f32.mrf.mxu0
    %v1171 = vadd.f32 %v1013, %v1170
    %v1172 = vpop.f32.mrf.mxu0
    %v1173 = vadd.f32 %v1013, %v1172
    %1174 = vmatprep.mubr.f32.mxu0 %v923
    %1175 = vmatmul.mubr.f32.gmra.mxu0 %v922
    %v1176 = vpop.f32.mrf.mxu0
    %v1177 = vadd.f32 %v1018, %v1176
    %v1178 = vpop.f32.mrf.mxu0
    %v1179 = vadd.f32 %v1018, %v1178
    %1180 = vdwg.mxu0
    %v1181 = vmax.f32 %v1087, 0.0
    %v1182 = vmax.f32 %v1089, 0.0
    %v1183 = vmax.f32 %v1093, 0.0
    %v1184 = vmax.f32 %v1095, 0.0
    %v1185 = vmax.f32 %v1099, 0.0
    %v1186 = vmax.f32 %v1101, 0.0
    %v1187 = vmax.f32 %v1105, 0.0
    %v1188 = vmax.f32 %v1107, 0.0
    %v1189 = vmax.f32 %v1111, 0.0
    %v1190 = vmax.f32 %v1113, 0.0
    %v1191 = vmax.f32 %v1117, 0.0
    %v1192 = vmax.f32 %v1119, 0.0
    %v1193 = vmax.f32 %v1123, 0.0
    %v1194 = vmax.f32 %v1125, 0.0
    %v1195 = vmax.f32 %v1129, 0.0
    %v1196 = vmax.f32 %v1131, 0.0
    %v1197 = vmax.f32 %v1135, 0.0
    %v1198 = vmax.f32 %v1137, 0.0
    %v1199 = vmax.f32 %v1141, 0.0
    %v1200 = vmax.f32 %v1143, 0.0
    %v1201 = vmax.f32 %v1147, 0.0
    %v1202 = vmax.f32 %v1149, 0.0
    %v1203 = vmax.f32 %v1153, 0.0
    %v1204 = vmax.f32 %v1155, 0.0
    %v1205 = vmax.f32 %v1159, 0.0
    %v1206 = vmax.f32 %v1161, 0.0
    %v1207 = vmax.f32 %v1165, 0.0
    %v1208 = vmax.f32 %v1167, 0.0
    %v1209 = vmax.f32 %v1171, 0.0
    %v1210 = vmax.f32 %v1173, 0.0
    %v1211 = vmax.f32 %v1177, 0.0
    %v1212 = vmax.f32 %v1179, 0.0
    %v1213 = vld [vmem:[%s5] sm:$0xff]
    %v1214 = vld [vmem:[%s5 + $0x8] sm:$0xff]
    %v1215 = vld [vmem:[%s5 + $0x10] sm:$0xff]
    %v1216 = vld [vmem:[%s5 + $0x18] sm:$0xff]
    %v1217 = vld [vmem:[%s5 + $0x20] sm:$0xff]
    %v1218 = vld [vmem:[%s5 + $0x28] sm:$0xff]
    %v1219 = vld [vmem:[%s5 + $0x30] sm:$0xff]
    %v1220 = vld [vmem:[%s5 + $0x38] sm:$0xff]
    %v1221 = vld [vmem:[%s6] sm:$0xff]
    %v1222 = vld [vmem:[%s6 + $0x8] sm:$0xff]
    %v1223 = vld [vmem:[%s6 + $0x10] sm:$0xff]
    %v1224 = vld [vmem:[%s6 + $0x18] sm:$0xff]
    %v1225 = vld [vmem:[%s6 + $0x20] sm:$0xff]
    %v1226 = vld [vmem:[%s6 + $0x28] sm:$0xff]
    %v1227 = vld [vmem:[%s6 + $0x30] sm:$0xff]
    %v1228 = vld [vmem:[%s6 + $0x38] sm:$0xff]
    %1230 = vset.pattern.permute.xlu0 0
    %1231 = vperm.xlu0 %1230, %v1221
    %v1232 = vpop.permute.xlu0 %1231
    %1235 = vset.pattern.permute.xlu0 0
    %1236 = vperm.xlu0 %1235, %v1222
    %v1237 = vpop.permute.xlu0 %1236
    %1240 = vset.pattern.permute.xlu0 0
    %1241 = vperm.xlu0 %1240, %v1223
    %v1242 = vpop.permute.xlu0 %1241
    %1245 = vset.pattern.permute.xlu0 0
    %1246 = vperm.xlu0 %1245, %v1224
    %v1247 = vpop.permute.xlu0 %1246
    %1250 = vset.pattern.permute.xlu0 0
    %1251 = vperm.xlu0 %1250, %v1225
    %v1252 = vpop.permute.xlu0 %1251
    %1255 = vset.pattern.permute.xlu0 0
    %1256 = vperm.xlu0 %1255, %v1226
    %v1257 = vpop.permute.xlu0 %1256
    %1260 = vset.pattern.permute.xlu0 0
    %1261 = vperm.xlu0 %1260, %v1227
    %v1262 = vpop.permute.xlu0 %1261
    %1265 = vset.pattern.permute.xlu0 0
    %1266 = vperm.xlu0 %1265, %v1228
    %v1267 = vpop.permute.xlu0 %1266
    %1269 = vmatprep.subr.mxu0 %v1212
    %1270 = vmatpush1.msra.mxu0 %v1211
    %1271 = vmatprep.subr.mxu0 %v1210
    %1272 = vmatpush1.msra.mxu0 %v1209
    %1273 = vmatprep.subr.mxu0 %v1208
    %1274 = vmatpush1.msra.mxu0 %v1207
    %1275 = vmatprep.subr.mxu0 %v1206
    %1276 = vmatpush1.msra.mxu0 %v1205
    %1277 = vmatprep.subr.mxu0 %v1204
    %1278 = vmatpush1.msra.mxu0 %v1203
    %1279 = vmatprep.subr.mxu0 %v1202
    %1280 = vmatpush1.msra.mxu0 %v1201
    %1281 = vmatprep.subr.mxu0 %v1200
    %1282 = vmatpush1.msra.mxu0 %v1199
    %1283 = vmatprep.subr.mxu0 %v1198
    %1284 = vmatpush1.msra.mxu0 %v1197
    %1285 = vmatprep.subr.mxu0 %v1196
    %1286 = vmatpush1.msra.mxu0 %v1195
    %1287 = vmatprep.subr.mxu0 %v1194
    %1288 = vmatpush1.msra.mxu0 %v1193
    %1289 = vmatprep.subr.mxu0 %v1192
    %1290 = vmatpush1.msra.mxu0 %v1191
    %1291 = vmatprep.subr.mxu0 %v1190
    %1292 = vmatpush1.msra.mxu0 %v1189
    %1293 = vmatprep.subr.mxu0 %v1188
    %1294 = vmatpush1.msra.mxu0 %v1187
    %1295 = vmatprep.subr.mxu0 %v1186
    %1296 = vmatpush1.msra.mxu0 %v1185
    %1297 = vmatprep.subr.mxu0 %v1184
    %1298 = vmatpush1.msra.mxu0 %v1183
    %1299 = vmatprep.subr.mxu0 %v1182
    %1300 = vmatpush1.msra.mxu0 %v1181
    %1301 = vmatprep.subr.mxu0 0.0
    %1302 = vmatpush2.msra.mxu0 0.0
    %1303 = vmatprep.subr.mxu0 0.0
    %1304 = vmatpush2.msra.mxu0 0.0
    %1305 = vmatprep.subr.mxu0 0.0
    %1306 = vmatpush2.msra.mxu0 0.0
    %1307 = vmatprep.subr.mxu0 0.0
    %1308 = vmatpush2.msra.mxu0 0.0
    %1309 = vmatprep.subr.mxu0 0.0
    %1310 = vmatpush2.msra.mxu0 0.0
    %1311 = vmatprep.subr.mxu0 0.0
    %1312 = vmatpush2.msra.mxu0 0.0
    %1313 = vmatprep.subr.mxu0 0.0
    %1314 = vmatpush2.msra.mxu0 0.0
    %1315 = vmatprep.subr.mxu0 0.0
    %1316 = vmatpush2.msra.mxu0 0.0
    %1317 = vmatprep.subr.mxu0 0.0
    %1318 = vmatpush2.msra.mxu0 0.0
    %1319 = vmatprep.subr.mxu0 0.0
    %1320 = vmatpush2.msra.mxu0 0.0
    %1321 = vmatprep.subr.mxu0 0.0
    %1322 = vmatpush2.msra.mxu0 0.0
    %1323 = vmatprep.subr.mxu0 0.0
    %1324 = vmatpush2.msra.mxu0 0.0
    %1325 = vmatprep.subr.mxu0 0.0
    %1326 = vmatpush2.msra.mxu0 0.0
    %1327 = vmatprep.subr.mxu0 0.0
    %1328 = vmatpush2.msra.mxu0 0.0
    %1329 = vmatprep.subr.mxu0 0.0
    %1330 = vmatpush2.msra.mxu0 0.0
    %1331 = vmatprep.subr.mxu0 0.0
    %1332 = vmatpush2.msra.mxu0 0.0
    %1333 = vmatprep.mubr.f32.mxu0 0.0
    %1334 = vmatmul.mubr.f32.gmra.mxu0 %v1213
    %v1335 = vpop.f32.mrf.mxu0
    %v1336 = vadd.f32 %v1232, %v1335
    %v1337 = vpop.f32.mrf.mxu0
    %v1338 = vadd.f32 %v1232, %v1337
    %1339 = vmatprep.mubr.f32.mxu0 0.0
    %1340 = vmatmul.mubr.f32.gmra.mxu0 %v1214
    %v1341 = vpop.f32.mrf.mxu0
    %v1342 = vadd.f32 %v1237, %v1341
    %v1343 = vpop.f32.mrf.mxu0
    %v1344 = vadd.f32 %v1237, %v1343
    %1345 = vmatprep.mubr.f32.mxu0 0.0
    %1346 = vmatmul.mubr.f32.gmra.mxu0 %v1215
    %v1347 = vpop.f32.mrf.mxu0
    %v1348 = vadd.f32 %v1242, %v1347
    %v1349 = vpop.f32.mrf.mxu0
    %v1350 = vadd.f32 %v1242, %v1349
    %1351 = vmatprep.mubr.f32.mxu0 0.0
    %1352 = vmatmul.mubr.f32.gmra.mxu0 %v1216
    %v1353 = vpop.f32.mrf.mxu0
    %v1354 = vadd.f32 %v1247, %v1353
    %v1355 = vpop.f32.mrf.mxu0
    %v1356 = vadd.f32 %v1247, %v1355
    %1357 = vmatprep.mubr.f32.mxu0 0.0
    %1358 = vmatmul.mubr.f32.gmra.mxu0 %v1217
    %v1359 = vpop.f32.mrf.mxu0
    %v1360 = vadd.f32 %v1252, %v1359
    %v1361 = vpop.f32.mrf.mxu0
    %v1362 = vadd.f32 %v1252, %v1361
    %1363 = vmatprep.mubr.f32.mxu0 0.0
    %1364 = vmatmul.mubr.f32.gmra.mxu0 %v1218
    %v1365 = vpop.f32.mrf.mxu0
    %v1366 = vadd.f32 %v1257, %v1365
    %v1367 = vpop.f32.mrf.mxu0
    %v1368 = vadd.f32 %v1257, %v1367
    %1369 = vmatprep.mubr.f32.mxu0 0.0
    %1370 = vmatmul.mubr.f32.gmra.mxu0 %v1219
    %v1371 = vpop.f32.mrf.mxu0
    %v1372 = vadd.f32 %v1262, %v1371
    %v1373 = vpop.f32.mrf.mxu0
    %v1374 = vadd.f32 %v1262, %v1373
    %1375 = vmatprep.mubr.f32.mxu0 0.0
    %1376 = vmatmul.mubr.f32.gmra.mxu0 %v1220
    %v1377 = vpop.f32.mrf.mxu0
    %v1378 = vadd.f32 %v1267, %v1377
    %v1379 = vpop.f32.mrf.mxu0
    %v1380 = vadd.f32 %v1267, %v1379
    %1381 = vdwg.mxu0
    %v1382 = vmax.f32 %v1336, 0.0
    %v1383 = vmax.f32 %v1338, 0.0
    %v1384 = vmax.f32 %v1342, 0.0
    %v1385 = vmax.f32 %v1344, 0.0
    %v1386 = vmax.f32 %v1348, 0.0
    %v1387 = vmax.f32 %v1350, 0.0
    %v1388 = vmax.f32 %v1354, 0.0
    %v1389 = vmax.f32 %v1356, 0.0
    %v1390 = vmax.f32 %v1360, 0.0
    %v1391 = vmax.f32 %v1362, 0.0
    %v1392 = vmax.f32 %v1366, 0.0
    %v1393 = vmax.f32 %v1368, 0.0
    %v1394 = vmax.f32 %v1372, 0.0
    %v1395 = vmax.f32 %v1374, 0.0
    %v1396 = vmax.f32 %v1378, 0.0
    %v1397 = vmax.f32 %v1380, 0.0
    %v1398 = vld [vmem:[%s7] sm:$0xff]
    %v1399 = vld [vmem:[%s7 + $0x8] sm:$0xff]
    %v1400 = vld [vmem:[%s7 + $0x10] sm:$0xff]
    %v1401 = vld [vmem:[%s7 + $0x18] sm:$0xff]
    %v1402 = vld [vmem:[%s7 + $0x20] sm:$0xff]
    %v1403 = vld [vmem:[%s7 + $0x28] sm:$0xff]
    %v1404 = vld [vmem:[%s7 + $0x30] sm:$0xff]
    %v1405 = vld [vmem:[%s7 + $0x38] sm:$0xff]
    %1407 = vset.pattern.permute.xlu0 0
    %1408 = vperm.xlu0 %1407, %v1398
    %v1409 = vpop.permute.xlu0 %1408
    %1412 = vset.pattern.permute.xlu0 0
    %1413 = vperm.xlu0 %1412, %v1399
    %v1414 = vpop.permute.xlu0 %1413
    %1417 = vset.pattern.permute.xlu0 0
    %1418 = vperm.xlu0 %1417, %v1400
    %v1419 = vpop.permute.xlu0 %1418
    %1422 = vset.pattern.permute.xlu0 0
    %1423 = vperm.xlu0 %1422, %v1401
    %v1424 = vpop.permute.xlu0 %1423
    %1427 = vset.pattern.permute.xlu0 0
    %1428 = vperm.xlu0 %1427, %v1402
    %v1429 = vpop.permute.xlu0 %1428
    %1432 = vset.pattern.permute.xlu0 0
    %1433 = vperm.xlu0 %1432, %v1403
    %v1434 = vpop.permute.xlu0 %1433
    %1437 = vset.pattern.permute.xlu0 0
    %1438 = vperm.xlu0 %1437, %v1404
    %v1439 = vpop.permute.xlu0 %1438
    %1442 = vset.pattern.permute.xlu0 0
    %1443 = vperm.xlu0 %1442, %v1405
    %v1444 = vpop.permute.xlu0 %1443
    %v1446 = vmul.f32 %v1409, %v1382
    %v1447 = vmul.f32 %v1409, %v1383
    %v1448 = vmul.f32 %v1414, %v1384
    %v1449 = vmul.f32 %v1414, %v1385
    %v1450 = vmul.f32 %v1419, %v1386
    %v1451 = vmul.f32 %v1419, %v1387
    %v1452 = vmul.f32 %v1424, %v1388
    %v1453 = vmul.f32 %v1424, %v1389
    %v1454 = vmul.f32 %v1429, %v1390
    %v1455 = vmul.f32 %v1429, %v1391
    %v1456 = vmul.f32 %v1434, %v1392
    %v1457 = vmul.f32 %v1434, %v1393
    %v1458 = vmul.f32 %v1439, %v1394
    %v1459 = vmul.f32 %v1439, %v1395
    %v1460 = vmul.f32 %v1444, %v1396
    %v1461 = vmul.f32 %v1444, %v1397
    %v1462 = vadd.f32 %v1446, %v1448
    %v1463 = vadd.f32 %v1462, %v1450
    %v1464 = vadd.f32 %v1463, %v1452
    %v1465 = vadd.f32 %v1464, %v1454
    %v1466 = vadd.f32 %v1465, %v1456
    %v1467 = vadd.f32 %v1466, %v1458
    %v1468 = vadd.f32 %v1467, %v1460
    %v1469 = vrot.slane %v1468, 4
    %v1470 = vadd.f32 %v1468, %v1469
    %v1471 = vrot.slane %v1470, 2
    %v1472 = vadd.f32 %v1470, %v1471
    %v1473 = vrot.slane %v1472, 1
    %v1474 = vadd.f32 %v1472, %v1473
    %v1475 = vadd.f32 %v1447, %v1449
    %v1476 = vadd.f32 %v1475, %v1451
    %v1477 = vadd.f32 %v1476, %v1453
    %v1478 = vadd.f32 %v1477, %v1455
    %v1479 = vadd.f32 %v1478, %v1457
    %v1480 = vadd.f32 %v1479, %v1459
    %v1481 = vadd.f32 %v1480, %v1461
    %v1482 = vrot.slane %v1481, 4
    %v1483 = vadd.f32 %v1481, %v1482
    %v1484 = vrot.slane %v1483, 2
    %v1485 = vadd.f32 %v1483, %v1484
    %v1486 = vrot.slane %v1485, 1
    %v1487 = vadd.f32 %v1485, %v1486
    %v1488 = vld [vmem:[#allocation2] sm:$0x1]
    %1490 = vset.pattern.permute.xlu0 0
    %1491 = vperm.xlu0 %1490, %v1488
    %v1492 = vpop.permute.xlu0 %1491
    %v1494 = vlaneseq
    %v1495 = vshrl.u32 %v1494, 7
    %v1496 = vsub.s32 0, %v1495
    %v1497 = vrot.slane %v1492, %v1496
    %v1498 = vadd.f32 %v1474, %v1497
    %v1499 = vadd.f32 %v1487, %v1497
    %v1500 = vsub.f32 0.0, %v1498
    %v1501 = vsub.f32 0.0, %v1499
    %v1502 = vmul.f32 %v1500, 1.442695
    %v1503 = vpow.pop %v1502
    %v1504 = vmul.f32 %v1501, 1.442695
    %v1505 = vpow.pop %v1504
    %v1506 = vadd.f32 %v1503, 1.0
    %v1507 = vadd.f32 %v1505, 1.0
    %v1508 = vrcp.pop %v1506
    %v1509 = vrcp.pop %v1507
    %v1512 = vcombine.low %v1508, %v1509
    %v1514 = vunpack.c.l.s4 1966171168
    %v1515 = vunpack.c.0.s8 %v1514
    %v1516 = vlaneseq
    %v1517 = vshrl.u32 %v1516, 7
    %v1518 = vsub.s32 %v1515, %v1517
    %v1519 = vrot.slane %v1512, %v1518
    %v1521 = vunpack.c.l.s4 1966171168
    %v1522 = vunpack.c.0.s8 %v1521
    %v1523 = vlaneseq
    %v1524 = vshrl.u32 %v1523, 7
    %v1525 = vsub.s32 %v1522, %v1524
    %v1526 = vrot.slane %v1519, %v1525
    %v1528 = vlaneseq
    %vm1529 = vcmp.ge.s32.totalorder %v1528, 0
    %vm1530 = vcmp.lt.s32.totalorder %v1528, 256
    %vm1531 = vmand %vm1529, %vm1530
    %1532 = vst.msk [vmem:[#allocation3] sm:$0x3] %vm1531, %v1526
    // Predicated region
    $region38: #{tpu_custom_call.1} parent=1 // pred_check
      _
    $region39: #{tpu_custom_call.1} parent=1 // pred_check_branch
      %1534 = sbr.rel (0) target = $region41
    $region40: #{tpu_custom_call.1} parent=1 // pred_region
      %s1536 = ssub.s32 32, 32
      %1537 = vsyncadd [#allocation4], %s1536
      %s1539 = sshll.u32 [#allocation3], 4
      %s1540 = int_to_ptr.vmem [resolvable:$true] %s1539
      %1542 = dma.vmem_to_hbm [thread:$0]  %s1540, 32, %s9, [#allocation4]
    $region41: #{tpu_custom_call.1} parent=1 // pred_fallthru
      _
    // Predicated region
    $region42: #{tpu_custom_call.1} parent=1 // pred_check
      _
    $region43: #{tpu_custom_call.1} parent=1 // pred_check_branch
      %1544 = sbr.rel (0) target = $region45
    $region44: #{tpu_custom_call.1} parent=1 // pred_region
      %1545 = dma.done [#allocation4], 32
    $region45: #{tpu_custom_call.1} parent=1 // pred_fallthru
      _
    %1546 = vsyncpa [#allocation4], 1

</llo_original>
